<compile_context>
chip_gen: v7x
topology: tpu7x:2x2x1
jax: 0.10.0
libtpu: 0.0.40
codegen_flags: <defaults>
</compile_context>

<pallas_src>
import functools

import jax
import jax.numpy as jnp
from jax.experimental import pallas as pl
from jax.experimental.pallas import tpu as pltpu

LANE = 128
BN_EPS = 1e-5
VMEM_LIMIT = 48 * 1024 * 1024          # <= 75% of v7x's 64 MiB physical VMEM


def round_up(x, m):
    return (x + m - 1) // m * m


# ----------------------------- Pallas kernels ------------------------------ #

def conv_stats_kernel(x_ref, w_ref, y_ref, st_ref):
    """One row-tile of the 3x3 conv + fused BN partial statistics.

    x_ref : (1, (th+2)*W, K3p)  bf16  padded rows of H (halo=1) x W, with the
                                      3 kx-taps packed into the lane (K) dim.
    w_ref : (3, K3p, Coutp)     bf16  one (K, Cout) matrix per ky-tap (resident).
    y_ref : (1, th*W, Coutp)    bf16/f32  conv pre-activation for this tile.
    st_ref: (1, 1, 2*Coutp)     f32   lane-packed [sum | sum_of_squares].
    """
    tw = y_ref.shape[1]                      # th * W output rows in this tile
    wcols = (x_ref.shape[1] - tw) // 2       # = W  (one halo row of H per side)

    acc = None
    for ky in range(3):                      # 3 shifted-block dot-accumulates (MXU)
        a = x_ref[0, ky * wcols: ky * wcols + tw, :]          # static, aligned slice
        p = jnp.dot(a, w_ref[ky], preferred_element_type=jnp.float32)
        acc = p if acc is None else acc + p
    y_ref[0] = acc.astype(y_ref.dtype)       # stats below use the f32 acc, not this

    # BN statistics ride along in the MXU-bound conv pass (f32 partial sums,
    # reduced across tiles outside the kernel -> keeps the grid axis "parallel").
    # Lane-dense (1, 2*Coutp) store: fully unmasked, no sublane relayout.
    # NOTE(v5e): these two XLU axis-0 sums are hidden under the MXU on v6e/v7x;
    # if they bind on v5e at tiny K3p, fold them into a 4th MXU dot with ones.
    ssum = jnp.sum(acc, axis=0, keepdims=True)
    ssq = jnp.sum(acc * acc, axis=0, keepdims=True)
    st_ref[0] = jnp.concatenate([ssum, ssq], axis=-1)


def bn_relu_kernel(y_ref, s_ref, t_ref, o_ref):
    # y * scale + shift, then ReLU. scale/shift already fold mean/var/gamma/beta.
    o_ref[...] = jnp.maximum(y_ref[...] * s_ref[...] + t_ref[...], 0.0)


# ----------------------------- Pallas wrappers ----------------------------- #

def conv3x3_stats(xb, w_packed, tw, y_dtype):
    """xb: (NB, (th+2)*W, K3p) bf16, w: (3, K3p, Coutp) bf16 -> (y, stats)."""
    NB, L, K3p = xb.shape
    Coutp = w_packed.shape[2]
    y, st = pl.pallas_call(
        conv_stats_kernel,
        out_shape=(jax.ShapeDtypeStruct((NB, tw, Coutp), y_dtype),
                   jax.ShapeDtypeStruct((NB, 1, 2 * Coutp), jnp.float32)),
        grid_spec=pltpu.PrefetchScalarGridSpec(
            num_scalar_prefetch=0,
            grid=(NB,),
            in_specs=[
                pl.BlockSpec((1, L, K3p), lambda i: (i, 0, 0)),
                pl.BlockSpec((3, K3p, Coutp), lambda i: (0, 0, 0)),  # resident weight
            ],
            out_specs=[
                pl.BlockSpec((1, tw, Coutp), lambda i: (i, 0, 0)),
                pl.BlockSpec((1, 1, 2 * Coutp), lambda i: (i, 0, 0)),
            ]),
        compiler_params=pltpu.CompilerParams(
            dimension_semantics=("parallel",),
            vmem_limit_bytes=VMEM_LIMIT),
    )(xb, w_packed)
    return y, st


def pick_m_tile(M):
    """Largest power-of-two row tile (<= 2048) dividing M, preferring >= 2 tiles
    so both v7x TensorCores get work; returns 0 if M has no multiple-of-8 divisor."""
    single = 0
    for tm in (2048, 1024, 512, 256, 128, 64, 32, 16, 8):
        if M % tm == 0:
            if M // tm >= 2:
                return tm
            if single == 0:
                single = tm
    return single


def bn_relu(y, scale, shift):
    """y: (M, Coutp) f32, scale/shift: (1, Coutp) f32 -> relu(y*scale+shift)."""
    M, C = y.shape
    tm = pick_m_tile(M)
    if tm == 0:
        # TODO(synk): in-kernel tail mask instead; pad+slice cost two extra HBM
        # copies on this mem-bound path (only hit when M is not a multiple of 8).
        tm = min(1024, round_up(M, 8))
        Mp = round_up(M, tm)
        yp = jnp.pad(y, ((0, Mp - M), (0, 0)))
    else:
        Mp, yp = M, y
    out = pl.pallas_call(
        bn_relu_kernel,
        out_shape=jax.ShapeDtypeStruct((Mp, C), jnp.float32),
        grid_spec=pltpu.PrefetchScalarGridSpec(
            num_scalar_prefetch=0,
            grid=(Mp // tm,),
            in_specs=[
                pl.BlockSpec((tm, C), lambda i: (i, 0)),
                pl.BlockSpec((1, C), lambda i: (0, 0)),
                pl.BlockSpec((1, C), lambda i: (0, 0)),
            ],
            out_specs=pl.BlockSpec((tm, C), lambda i: (i, 0))),
        compiler_params=pltpu.CompilerParams(
            dimension_semantics=("parallel",),
            vmem_limit_bytes=VMEM_LIMIT),
    )(yp, scale, shift)
    return out[:M] if Mp != M else out


# ------------------------------- JAX glue ---------------------------------- #

def pick_row_tile(H, W, N, k3p, coutp, target_rows=512, min_grid=4):
    """Choose th (a divisor of H) for row-tiling so that
       * the double-buffered per-step footprint fits a conservative VMEM budget
         (re-derived for v7x's 64 MiB, not v5e/v6e's 128 MiB),
       * tile rows stay around ~target_rows (amortize ~0.35us/step overhead),
       * the grid length N*(H//th) is >= min_grid and even (both v7x cores busy).
    Falls back gracefully rather than degrading to th=1 tiles."""
    budget = int(VMEM_LIMIT * 0.75)

    def fits(th):
        x_b = 2 * (th + 2) * W * k3p * 2           # bf16 input tile, double-buffered
        w_b = 2 * 3 * k3p * coutp * 2              # resident packed weight
        y_b = 2 * th * W * coutp * 4               # output tile (f32 worst case)
        s_b = 2 * 2 * coutp * 4                    # stats
        return x_b + w_b + y_b + s_b <= budget

    def grid_ok(th):
        nb = N * (H // th)
        return nb >= min_grid and nb % 2 == 0

    divs = [d for d in range(1, H + 1) if H % d == 0]
    for cond in (lambda t: fits(t) and t * W <= target_rows and grid_ok(t),
                 lambda t: fits(t) and t * W <= max(target_rows, W),
                 lambda t: fits(t)):
        cands = [t for t in divs if cond(t)]
        if cands:
            return max(cands, key=lambda t: t * W)
    # TODO(synk): pad H (with masked stats) for pathological H with no divisor.
    return 1


def pack_conv_input(x, cin, th, k3p, scale=None, shift=None):
    """(N,H,W,C>=cin) -> (N*nt, (th+2)*W, K3p) bf16 row-tiles with H-halo=1.

    If scale/shift are given they are the PREVIOUS layer's BN affine: this
    applies relu(x*scale + shift) before the spatial zero-pad, fusing the
    inter-layer BN+ReLU into the single XLA packing fusion (no standalone
    elementwise pass, no extra HBM round trip of the intermediate activation).
    The 3 kx-taps of the 3x3 kernel are packed into the (zero-padded) lane dim,
    so the Pallas kernel only needs 3 ky-shifted dots per tile.
    """
    N, H, W, _ = x.shape
    x = x[..., :cin]
    if scale is not None:
        x = jnp.maximum(x.astype(jnp.float32) * scale + shift, 0.0)
    x = x.astype(jnp.bfloat16)
    # NOTE: W % 8 == 0 keeps the in-kernel ky*W slice starts sublane-aligned
    # (true for typical U-Net sizes); other W are still correct, just slower.
    xp = jnp.pad(x, ((0, 0), (1, 1), (1, 1), (0, 0)))          # spatial zero pad
    taps = [xp[:, :, kx:kx + W, :] for kx in range(3)]         # kx taps
    xw = jnp.concatenate(taps, axis=-1)                        # (N, H+2, W, 3*cin)
    xw = jnp.pad(xw, ((0, 0), (0, 0), (0, 0), (0, k3p - 3 * cin)))
    nt = H // th
    blocks = [xw[:, i * th: i * th + th + 2] for i in range(nt)]   # halo rows
    xb = jnp.stack(blocks, axis=1)                             # (N, nt, th+2, W, K3p)
    return xb.reshape(N * nt, (th + 2) * W, k3p)


def conv_layer(x, w_packed, gamma_p, beta_p, *, cin, prev_scale=None,
               prev_shift=None, y_dtype=jnp.float32):
    """3x3 conv (pad=1, bias dropped -- exact under training-mode BN) + fused BN
    statistics.  If prev_scale/prev_shift are given, the previous layer's
    BN+ReLU is applied to x inside the packing fusion (x is that layer's raw
    pre-activation).  Returns this layer's raw pre-activation y (N,H,W,Coutp)
    in y_dtype and this layer's BN (scale, shift) in f32, padded to Coutp."""
    N, H, W, _ = x.shape
    K3p, Coutp = w_packed.shape[1], w_packed.shape[2]
    th = pick_row_tile(H, W, N, K3p, Coutp)
    xb = pack_conv_input(x, cin, th, K3p, prev_scale, prev_shift)
    y, st = conv3x3_stats(xb, w_packed, th * W, y_dtype)      # Pallas: conv + stats

    M = N * H * W
    ssum = jnp.sum(st[:, 0, :Coutp], axis=0)
    ssq = jnp.sum(st[:, 0, Coutp:], axis=0)
    mean = ssum / M
    var = jnp.maximum(ssq / M - mean * mean, 0.0)              # biased var, f32
    inv = jax.lax.rsqrt(var + BN_EPS)
    scale = gamma_p * inv
    shift = beta_p - mean * gamma_p * inv
    # Padded lanes: gamma/beta are zero-padded -> scale = shift = 0 -> exact 0s.
    return y.reshape(N, H, W, Coutp), scale, shift


def bilinear_up2_align_corners(x_nchw):
    """scale_factor=2 bilinear upsample with align_corners=True (NCHW)."""
    N, C, H, W = x_nchw.shape
    Ho, Wo = 2 * H, 2 * W
    ys = jnp.arange(Ho, dtype=jnp.float32) * (H - 1) / max(Ho - 1, 1)
    xs = jnp.arange(Wo, dtype=jnp.float32) * (W - 1) / max(Wo - 1, 1)
    y0 = jnp.floor(ys).astype(jnp.int32)
    x0 = jnp.floor(xs).astype(jnp.int32)
    y1 = jnp.minimum(y0 + 1, H - 1)
    x1 = jnp.minimum(x0 + 1, W - 1)
    wy = (ys - y0.astype(jnp.float32))[None, None, :, None]
    wx = (xs - x0.astype(jnp.float32))[None, None, None, :]
    top = x_nchw[:, :, y0, :]
    bot = x_nchw[:, :, y1, :]
    rows = top * (1.0 - wy) + bot * wy
    left = rows[:, :, :, x0]
    right = rows[:, :, :, x1]
    return left * (1.0 - wx) + right * wx


def up_forward(x1, x2, params, *, out_ch):
    """Equivalent of up.forward(x1, x2); x1, x2 are NCHW float32."""
    x1u = bilinear_up2_align_corners(x1)
    diffY = x2.shape[2] - x1u.shape[2]
    diffX = x2.shape[3] - x1u.shape[3]
    x1p = jnp.pad(
        x1u,
        ((0, 0), (0, 0),
         (diffY // 2, diffY - diffY // 2),
         (diffX // 2, diffX - diffX // 2)),
    )
    x = jnp.concatenate([x2, x1p], axis=1)   # NCHW, in_ch channels
    x = jnp.transpose(x, (0, 2, 3, 1))       # NHWC
    in_ch = x.shape[-1]

    # Layer 1: conv1 + fused BN statistics; raw pre-activation stored in bf16.
    y1, s1, t1 = conv_layer(x, params["w1"], params["g1"], params["be1"],
                            cin=in_ch, y_dtype=jnp.bfloat16)
    # Layer 2: BN1+ReLU folded into conv2's input-packing fusion (no standalone
    # elementwise pass); conv2 + fused BN statistics, f32 pre-activation.
    y2, s2, t2 = conv_layer(y1, params["w2"], params["g2"], params["be2"],
                            cin=out_ch, prev_scale=s1[:out_ch],
                            prev_shift=t1[:out_ch], y_dtype=jnp.float32)
    # Final BN2 + ReLU: tiled elementwise Pallas pass.
    N, H, W, coutp = y2.shape
    h = bn_relu(y2.reshape(N * H * W, coutp),
                s2.reshape(1, coutp), t2.reshape(1, coutp))
    h = h.reshape(N, H, W, coutp)[..., :out_ch]
    return jnp.transpose(h, (0, 3, 1, 2))    # back to NCHW


# ------------------------------ parameters --------------------------------- #

def make_params(key, in_ch, out_ch):
    ks = jax.random.split(key, 8)
    return {
        # double_conv: Conv2d(in_ch, out_ch, 3, pad=1) -> BN -> ReLU
        "w1": 0.1 * jax.random.normal(ks[0], (out_ch, in_ch, 3, 3), jnp.float32),
        # conv biases exist in the module but are exact no-ops under training-mode
        # BatchNorm (BN(x+b) == BN(x)); they are dropped from the kernels.
        "b1": 0.1 * jax.random.normal(ks[1], (out_ch,), jnp.float32),
        "g1": 1.0 + 0.1 * jax.random.normal(ks[2], (out_ch,), jnp.float32),
        "be1": 0.1 * jax.random.normal(ks[3], (out_ch,), jnp.float32),
        #               Conv2d(out_ch, out_ch, 3, pad=1) -> BN -> ReLU
        "w2": 0.1 * jax.random.normal(ks[4], (out_ch, out_ch, 3, 3), jnp.float32),
        "b2": 0.1 * jax.random.normal(ks[5], (out_ch,), jnp.float32),
        "g2": 1.0 + 0.1 * jax.random.normal(ks[6], (out_ch,), jnp.float32),
        "be2": 0.1 * jax.random.normal(ks[7], (out_ch,), jnp.float32),
    }


def pack_conv_weight(w_oihw, k3p, coutp):
    """(Cout,Cin,3,3) -> (3, K3p, Coutp) bf16, index [ky, kx*Cin + c, o], zero-padded."""
    cout, cin = w_oihw.shape[0], w_oihw.shape[1]
    wt = jnp.transpose(w_oihw, (2, 3, 1, 0)).reshape(3, 3 * cin, cout)
    wt = jnp.pad(wt, ((0, 0), (0, k3p - 3 * cin), (0, coutp - cout)))
    return wt.astype(jnp.bfloat16)


def pack_params(p, in_ch, out_ch):
    """One-time weight packing / padding (done at setup, not per forward call).

    IMPORTANT: gamma/beta MUST be zero-padded (not ones) so the padded output
    lanes get scale = shift = 0 and remain exactly zero after BN + ReLU."""
    coutp = round_up(out_ch, LANE)
    k3p1 = round_up(3 * in_ch, LANE)
    k3p2 = round_up(3 * out_ch, LANE)

    def padc(v):
        return jnp.pad(v, (0, coutp - out_ch)).astype(jnp.float32)

    return {
        "w1": pack_conv_weight(p["w1"], k3p1, coutp),
        "g1": padc(p["g1"]), "be1": padc(p["be1"]),
        "w2": pack_conv_weight(p["w2"], k3p2, coutp),
        "g2": padc(p["g2"]), "be2": padc(p["be2"]),
    }


if __name__ == "__main__":
    in_ch, out_ch = 8, 4          # up(in_ch=8, out_ch=4, bilinear=True)
    key = jax.random.PRNGKey(0)
    k1, k2, kp = jax.random.split(key, 3)

    # x1: decoder feature (in_ch//2 channels, half spatial), x2: skip connection.
    x1 = jax.random.normal(k1, (2, in_ch // 2, 8, 8), jnp.float32)
    x2 = jax.random.normal(k2, (2, in_ch // 2, 16, 16), jnp.float32)
    raw_params = make_params(kp, in_ch, out_ch)
    packed = pack_params(raw_params, in_ch, out_ch)

    fwd = jax.jit(functools.partial(up_forward, out_ch=out_ch))
    out = fwd(x1, x2, packed)
    jax.block_until_ready(out)
    assert out.shape == (2, out_ch, 16, 16)
    print("KERNEL_OK")
</pallas_src>

<mosaic_0001>
module attributes {stable_mosaic.version = 11 : i64} {
  func.func @conv_stats_kernel(%arg0: i32, %arg1: memref<1x160x128xbf16, #tpu.memory_space<vmem>>, %arg2: memref<3x128x128xbf16, #tpu.memory_space<vmem>>, %arg3: memref<1x128x128xbf16, #tpu.memory_space<vmem>>, %arg4: memref<1x1x256xf32, #tpu.memory_space<vmem>>) attributes {dimension_semantics = [#tpu.dimension_semantics<parallel>], iteration_bounds = array<i64: 4>, scalar_prefetch = 0 : i64, scratch_operands = 0 : i64, tpu.core_type = #tpu.core_type<tc>, window_params = [{transform_indices = @transform_0, window_bounds = array<i64: 1, 160, 128>}, {pipeline_mode = #tpu.pipeline_mode<synchronous>, transform_indices = @transform_1, window_bounds = array<i64: 3, 128, 128>}, {transform_indices = @transform_2, window_bounds = array<i64: 1, 128, 128>}, {transform_indices = @transform_3, window_bounds = array<i64: 1, 1, 256>}]} {
    %c0 = arith.constant 0 : index
    %c0_0 = arith.constant 0 : index
    %c0_1 = arith.constant 0 : index
    %0 = vector.load %arg1[%c0, %c0_0, %c0_1] : memref<1x160x128xbf16, #tpu.memory_space<vmem>>, vector<1x128x128xbf16>
    %1 = vector.shape_cast %0 : vector<1x128x128xbf16> to vector<128x128xbf16>
    %c0_2 = arith.constant 0 : index
    %c0_3 = arith.constant 0 : index
    %c0_4 = arith.constant 0 : index
    %2 = vector.load %arg2[%c0_2, %c0_3, %c0_4] : memref<3x128x128xbf16, #tpu.memory_space<vmem>>, vector<1x128x128xbf16>
    %3 = vector.shape_cast %2 : vector<1x128x128xbf16> to vector<128x128xbf16>
    %cst = arith.constant dense<0.000000e+00> : vector<128x128xf32>
    %4 = tpu.matmul %1, %3, %cst {dimension_numbers = #tpu.dot_dimension_numbers<[1], [0], [0], [1], [0, 0, 1, 1], [], []>} : vector<128x128xbf16>, vector<128x128xbf16>, vector<128x128xf32> -> vector<128x128xf32>
    %c0_5 = arith.constant 0 : index
    %c16 = arith.constant 16 : index
    %c0_6 = arith.constant 0 : index
    %5 = vector.load %arg1[%c0_5, %c16, %c0_6] : memref<1x160x128xbf16, #tpu.memory_space<vmem>>, vector<1x128x128xbf16>
    %6 = vector.shape_cast %5 : vector<1x128x128xbf16> to vector<128x128xbf16>
    %c1 = arith.constant 1 : index
    %c0_7 = arith.constant 0 : index
    %c0_8 = arith.constant 0 : index
    %7 = vector.load %arg2[%c1, %c0_7, %c0_8] : memref<3x128x128xbf16, #tpu.memory_space<vmem>>, vector<1x128x128xbf16>
    %8 = vector.shape_cast %7 : vector<1x128x128xbf16> to vector<128x128xbf16>
    %cst_9 = arith.constant dense<0.000000e+00> : vector<128x128xf32>
    %9 = tpu.matmul %6, %8, %cst_9 {dimension_numbers = #tpu.dot_dimension_numbers<[1], [0], [0], [1], [0, 0, 1, 1], [], []>} : vector<128x128xbf16>, vector<128x128xbf16>, vector<128x128xf32> -> vector<128x128xf32>
    %10 = arith.addf %4, %9 : vector<128x128xf32>
    %c0_10 = arith.constant 0 : index
    %c32 = arith.constant 32 : index
    %c0_11 = arith.constant 0 : index
    %11 = vector.load %arg1[%c0_10, %c32, %c0_11] : memref<1x160x128xbf16, #tpu.memory_space<vmem>>, vector<1x128x128xbf16>
    %12 = vector.shape_cast %11 : vector<1x128x128xbf16> to vector<128x128xbf16>
    %c2 = arith.constant 2 : index
    %c0_12 = arith.constant 0 : index
    %c0_13 = arith.constant 0 : index
    %13 = vector.load %arg2[%c2, %c0_12, %c0_13] : memref<3x128x128xbf16, #tpu.memory_space<vmem>>, vector<1x128x128xbf16>
    %14 = vector.shape_cast %13 : vector<1x128x128xbf16> to vector<128x128xbf16>
    %cst_14 = arith.constant dense<0.000000e+00> : vector<128x128xf32>
    %15 = tpu.matmul %12, %14, %cst_14 {dimension_numbers = #tpu.dot_dimension_numbers<[1], [0], [0], [1], [0, 0, 1, 1], [], []>} : vector<128x128xbf16>, vector<128x128xbf16>, vector<128x128xf32> -> vector<128x128xf32>
    %16 = arith.addf %10, %15 : vector<128x128xf32>
    %17 = arith.truncf %16 : vector<128x128xf32> to vector<128x128xbf16>
    %c0_15 = arith.constant 0 : index
    %c0_16 = arith.constant 0 : index
    %c0_17 = arith.constant 0 : index
    %18 = vector.load %arg3[%c0_15, %c0_16, %c0_17] : memref<1x128x128xbf16, #tpu.memory_space<vmem>>, vector<1x128x128xbf16>
    %19 = vector.shape_cast %18 : vector<1x128x128xbf16> to vector<128x128xbf16>
    %20 = vector.shape_cast %17 : vector<128x128xbf16> to vector<1x128x128xbf16>
    tpu.vector_store %arg3[%c0_15, %c0_16, %c0_17], %20 {strides = array<i32>} : memref<1x128x128xbf16, #tpu.memory_space<vmem>>, vector<1x128x128xbf16>,
    %cst_18 = arith.constant dense<0.000000e+00> : vector<128xf32>
    %21 = vector.multi_reduction <add>, %16, %cst_18 [0] : vector<128x128xf32> to vector<128xf32>
    %22 = vector.shape_cast %21 : vector<128xf32> to vector<1x128xf32>
    %23 = arith.mulf %16, %16 : vector<128x128xf32>
    %cst_19 = arith.constant dense<0.000000e+00> : vector<128xf32>
    %24 = vector.multi_reduction <add>, %23, %cst_19 [0] : vector<128x128xf32> to vector<128xf32>
    %25 = vector.shape_cast %24 : vector<128xf32> to vector<1x128xf32>
    %26 = tpu.concatenate %22, %25 in 1 : vector<1x128xf32>, vector<1x128xf32> -> vector<1x256xf32>
    %c0_20 = arith.constant 0 : index
    %c0_21 = arith.constant 0 : index
    %c0_22 = arith.constant 0 : index
    %27 = vector.load %arg4[%c0_20, %c0_21, %c0_22] : memref<1x1x256xf32, #tpu.memory_space<vmem>>, vector<1x1x256xf32>
    %28 = vector.shape_cast %27 : vector<1x1x256xf32> to vector<1x256xf32>
    %29 = vector.shape_cast %26 : vector<1x256xf32> to vector<1x1x256xf32>
    tpu.vector_store %arg4[%c0_20, %c0_21, %c0_22], %29 {strides = array<i32>} : memref<1x1x256xf32, #tpu.memory_space<vmem>>, vector<1x1x256xf32>,
    return
  }
  func.func @transform_0(%arg0: i32) -> (i32, i32, i32) {
    %c0_i32 = arith.constant 0 : i32
    %c0_i32_0 = arith.constant 0 : i32
    %c0_i32_1 = arith.constant 0 : i32
    return %arg0, %c0_i32, %c0_i32_0 : i32, i32, i32
  }
  func.func @transform_1(%arg0: i32) -> (i32, i32, i32) {
    %c0_i32 = arith.constant 0 : i32
    %c0_i32_0 = arith.constant 0 : i32
    %c0_i32_1 = arith.constant 0 : i32
    %c0_i32_2 = arith.constant 0 : i32
    return %c0_i32, %c0_i32_0, %c0_i32_1 : i32, i32, i32
  }
  func.func @transform_2(%arg0: i32) -> (i32, i32, i32) {
    %c0_i32 = arith.constant 0 : i32
    %c0_i32_0 = arith.constant 0 : i32
    %c0_i32_1 = arith.constant 0 : i32
    return %arg0, %c0_i32, %c0_i32_0 : i32, i32, i32
  }
  func.func @transform_3(%arg0: i32) -> (i32, i32, i32) {
    %c0_i32 = arith.constant 0 : i32
    %c0_i32_0 = arith.constant 0 : i32
    %c0_i32_1 = arith.constant 0 : i32
    return %arg0, %c0_i32, %c0_i32_0 : i32, i32, i32
  }
}

module attributes {stable_mosaic.version = 11 : i64} {
  func.func @conv_stats_kernel(%arg0: i32, %arg1: memref<1x160x128xbf16, #tpu.memory_space<vmem>>, %arg2: memref<3x128x128xbf16, #tpu.memory_space<vmem>>, %arg3: memref<1x128x128xf32, #tpu.memory_space<vmem>>, %arg4: memref<1x1x256xf32, #tpu.memory_space<vmem>>) attributes {dimension_semantics = [#tpu.dimension_semantics<parallel>], iteration_bounds = array<i64: 4>, scalar_prefetch = 0 : i64, scratch_operands = 0 : i64, tpu.core_type = #tpu.core_type<tc>, window_params = [{transform_indices = @transform_0, window_bounds = array<i64: 1, 160, 128>}, {pipeline_mode = #tpu.pipeline_mode<synchronous>, transform_indices = @transform_1, window_bounds = array<i64: 3, 128, 128>}, {transform_indices = @transform_2, window_bounds = array<i64: 1, 128, 128>}, {transform_indices = @transform_3, window_bounds = array<i64: 1, 1, 256>}]} {
    %c0 = arith.constant 0 : index
    %c0_0 = arith.constant 0 : index
    %c0_1 = arith.constant 0 : index
    %0 = vector.load %arg1[%c0, %c0_0, %c0_1] : memref<1x160x128xbf16, #tpu.memory_space<vmem>>, vector<1x128x128xbf16>
    %1 = vector.shape_cast %0 : vector<1x128x128xbf16> to vector<128x128xbf16>
    %c0_2 = arith.constant 0 : index
    %c0_3 = arith.constant 0 : index
    %c0_4 = arith.constant 0 : index
    %2 = vector.load %arg2[%c0_2, %c0_3, %c0_4] : memref<3x128x128xbf16, #tpu.memory_space<vmem>>, vector<1x128x128xbf16>
    %3 = vector.shape_cast %2 : vector<1x128x128xbf16> to vector<128x128xbf16>
    %cst = arith.constant dense<0.000000e+00> : vector<128x128xf32>
    %4 = tpu.matmul %1, %3, %cst {dimension_numbers = #tpu.dot_dimension_numbers<[1], [0], [0], [1], [0, 0, 1, 1], [], []>} : vector<128x128xbf16>, vector<128x128xbf16>, vector<128x128xf32> -> vector<128x128xf32>
    %c0_5 = arith.constant 0 : index
    %c16 = arith.constant 16 : index
    %c0_6 = arith.constant 0 : index
    %5 = vector.load %arg1[%c0_5, %c16, %c0_6] : memref<1x160x128xbf16, #tpu.memory_space<vmem>>, vector<1x128x128xbf16>
    %6 = vector.shape_cast %5 : vector<1x128x128xbf16> to vector<128x128xbf16>
    %c1 = arith.constant 1 : index
    %c0_7 = arith.constant 0 : index
    %c0_8 = arith.constant 0 : index
    %7 = vector.load %arg2[%c1, %c0_7, %c0_8] : memref<3x128x128xbf16, #tpu.memory_space<vmem>>, vector<1x128x128xbf16>
    %8 = vector.shape_cast %7 : vector<1x128x128xbf16> to vector<128x128xbf16>
    %cst_9 = arith.constant dense<0.000000e+00> : vector<128x128xf32>
    %9 = tpu.matmul %6, %8, %cst_9 {dimension_numbers = #tpu.dot_dimension_numbers<[1], [0], [0], [1], [0, 0, 1, 1], [], []>} : vector<128x128xbf16>, vector<128x128xbf16>, vector<128x128xf32> -> vector<128x128xf32>
    %10 = arith.addf %4, %9 : vector<128x128xf32>
    %c0_10 = arith.constant 0 : index
    %c32 = arith.constant 32 : index
    %c0_11 = arith.constant 0 : index
    %11 = vector.load %arg1[%c0_10, %c32, %c0_11] : memref<1x160x128xbf16, #tpu.memory_space<vmem>>, vector<1x128x128xbf16>
    %12 = vector.shape_cast %11 : vector<1x128x128xbf16> to vector<128x128xbf16>
    %c2 = arith.constant 2 : index
    %c0_12 = arith.constant 0 : index
    %c0_13 = arith.constant 0 : index
    %13 = vector.load %arg2[%c2, %c0_12, %c0_13] : memref<3x128x128xbf16, #tpu.memory_space<vmem>>, vector<1x128x128xbf16>
    %14 = vector.shape_cast %13 : vector<1x128x128xbf16> to vector<128x128xbf16>
    %cst_14 = arith.constant dense<0.000000e+00> : vector<128x128xf32>
    %15 = tpu.matmul %12, %14, %cst_14 {dimension_numbers = #tpu.dot_dimension_numbers<[1], [0], [0], [1], [0, 0, 1, 1], [], []>} : vector<128x128xbf16>, vector<128x128xbf16>, vector<128x128xf32> -> vector<128x128xf32>
    %16 = arith.addf %10, %15 : vector<128x128xf32>
    %c0_15 = arith.constant 0 : index
    %c0_16 = arith.constant 0 : index
    %c0_17 = arith.constant 0 : index
    %17 = vector.load %arg3[%c0_15, %c0_16, %c0_17] : memref<1x128x128xf32, #tpu.memory_space<vmem>>, vector<1x128x128xf32>
    %18 = vector.shape_cast %17 : vector<1x128x128xf32> to vector<128x128xf32>
    %19 = vector.shape_cast %16 : vector<128x128xf32> to vector<1x128x128xf32>
    tpu.vector_store %arg3[%c0_15, %c0_16, %c0_17], %19 {strides = array<i32>} : memref<1x128x128xf32, #tpu.memory_space<vmem>>, vector<1x128x128xf32>,
    %cst_18 = arith.constant dense<0.000000e+00> : vector<128xf32>
    %20 = vector.multi_reduction <add>, %16, %cst_18 [0] : vector<128x128xf32> to vector<128xf32>
    %21 = vector.shape_cast %20 : vector<128xf32> to vector<1x128xf32>
    %22 = arith.mulf %16, %16 : vector<128x128xf32>
    %cst_19 = arith.constant dense<0.000000e+00> : vector<128xf32>
    %23 = vector.multi_reduction <add>, %22, %cst_19 [0] : vector<128x128xf32> to vector<128xf32>
    %24 = vector.shape_cast %23 : vector<128xf32> to vector<1x128xf32>
    %25 = tpu.concatenate %21, %24 in 1 : vector<1x128xf32>, vector<1x128xf32> -> vector<1x256xf32>
    %c0_20 = arith.constant 0 : index
    %c0_21 = arith.constant 0 : index
    %c0_22 = arith.constant 0 : index
    %26 = vector.load %arg4[%c0_20, %c0_21, %c0_22] : memref<1x1x256xf32, #tpu.memory_space<vmem>>, vector<1x1x256xf32>
    %27 = vector.shape_cast %26 : vector<1x1x256xf32> to vector<1x256xf32>
    %28 = vector.shape_cast %25 : vector<1x256xf32> to vector<1x1x256xf32>
    tpu.vector_store %arg4[%c0_20, %c0_21, %c0_22], %28 {strides = array<i32>} : memref<1x1x256xf32, #tpu.memory_space<vmem>>, vector<1x1x256xf32>,
    return
  }
  func.func @transform_0(%arg0: i32) -> (i32, i32, i32) {
    %c0_i32 = arith.constant 0 : i32
    %c0_i32_0 = arith.constant 0 : i32
    %c0_i32_1 = arith.constant 0 : i32
    return %arg0, %c0_i32, %c0_i32_0 : i32, i32, i32
  }
  func.func @transform_1(%arg0: i32) -> (i32, i32, i32) {
    %c0_i32 = arith.constant 0 : i32
    %c0_i32_0 = arith.constant 0 : i32
    %c0_i32_1 = arith.constant 0 : i32
    %c0_i32_2 = arith.constant 0 : i32
    return %c0_i32, %c0_i32_0, %c0_i32_1 : i32, i32, i32
  }
  func.func @transform_2(%arg0: i32) -> (i32, i32, i32) {
    %c0_i32 = arith.constant 0 : i32
    %c0_i32_0 = arith.constant 0 : i32
    %c0_i32_1 = arith.constant 0 : i32
    return %arg0, %c0_i32, %c0_i32_0 : i32, i32, i32
  }
  func.func @transform_3(%arg0: i32) -> (i32, i32, i32) {
    %c0_i32 = arith.constant 0 : i32
    %c0_i32_0 = arith.constant 0 : i32
    %c0_i32_1 = arith.constant 0 : i32
    return %arg0, %c0_i32, %c0_i32_0 : i32, i32, i32
  }
}

module attributes {stable_mosaic.version = 11 : i64} {
  func.func @bn_relu_kernel(%arg0: i32, %arg1: memref<256x128xf32, #tpu.memory_space<vmem>>, %arg2: memref<1x128xf32, #tpu.memory_space<vmem>>, %arg3: memref<1x128xf32, #tpu.memory_space<vmem>>, %arg4: memref<256x128xf32, #tpu.memory_space<vmem>>) attributes {dimension_semantics = [#tpu.dimension_semantics<parallel>], iteration_bounds = array<i64: 2>, scalar_prefetch = 0 : i64, scratch_operands = 0 : i64, tpu.core_type = #tpu.core_type<tc>, window_params = [{transform_indices = @transform_0, window_bounds = array<i64: 256, 128>}, {pipeline_mode = #tpu.pipeline_mode<synchronous>, transform_indices = @transform_1, window_bounds = array<i64: 1, 128>}, {pipeline_mode = #tpu.pipeline_mode<synchronous>, transform_indices = @transform_2, window_bounds = array<i64: 1, 128>}, {transform_indices = @transform_3, window_bounds = array<i64: 256, 128>}]} {
    %c0 = arith.constant 0 : index
    %c0_0 = arith.constant 0 : index
    %0 = vector.load %arg1[%c0, %c0_0] : memref<256x128xf32, #tpu.memory_space<vmem>>, vector<256x128xf32>
    %c0_1 = arith.constant 0 : index
    %c0_2 = arith.constant 0 : index
    %1 = vector.load %arg2[%c0_1, %c0_2] : memref<1x128xf32, #tpu.memory_space<vmem>>, vector<1x128xf32>
    %2 = vector.broadcast %1 : vector<1x128xf32> to vector<256x128xf32>
    %3 = arith.mulf %0, %2 : vector<256x128xf32>
    %c0_3 = arith.constant 0 : index
    %c0_4 = arith.constant 0 : index
    %4 = vector.load %arg3[%c0_3, %c0_4] : memref<1x128xf32, #tpu.memory_space<vmem>>, vector<1x128xf32>
    %5 = vector.broadcast %4 : vector<1x128xf32> to vector<256x128xf32>
    %6 = arith.addf %3, %5 : vector<256x128xf32>
    %cst = arith.constant 0.000000e+00 : f32
    %7 = vector.broadcast %cst : f32 to vector<256x128xf32>
    %8 = arith.maximumf %6, %7 : vector<256x128xf32>
    %c0_5 = arith.constant 0 : index
    %c0_6 = arith.constant 0 : index
    %9 = vector.load %arg4[%c0_5, %c0_6] : memref<256x128xf32, #tpu.memory_space<vmem>>, vector<256x128xf32>
    tpu.vector_store %arg4[%c0_5, %c0_6], %8 {strides = array<i32>} : memref<256x128xf32, #tpu.memory_space<vmem>>, vector<256x128xf32>,
    return
  }
  func.func @transform_0(%arg0: i32) -> (i32, i32) {
    %c0_i32 = arith.constant 0 : i32
    %c0_i32_0 = arith.constant 0 : i32
    return %arg0, %c0_i32 : i32, i32
  }
  func.func @transform_1(%arg0: i32) -> (i32, i32) {
    %c0_i32 = arith.constant 0 : i32
    %c0_i32_0 = arith.constant 0 : i32
    %c0_i32_1 = arith.constant 0 : i32
    return %c0_i32, %c0_i32_0 : i32, i32
  }
  func.func @transform_2(%arg0: i32) -> (i32, i32) {
    %c0_i32 = arith.constant 0 : i32
    %c0_i32_0 = arith.constant 0 : i32
    %c0_i32_1 = arith.constant 0 : i32
    return %c0_i32, %c0_i32_0 : i32, i32
  }
  func.func @transform_3(%arg0: i32) -> (i32, i32) {
    %c0_i32 = arith.constant 0 : i32
    %c0_i32_0 = arith.constant 0 : i32
    return %arg0, %c0_i32 : i32, i32
  }
}

</mosaic_0001>

<llo_original>
// kernel: up_forward.3
$region0: #{up_forward.3}
  #allocation0 [shape = 'u32[]', space=smem, size = 0x4, offset = 0x4, fixed_abs, tag = 'smem constant byte address 0x4 - core index']
  #allocation1 [shape = 'u32[144,128]{1,0:T(1,128)}', space=vmem, size = 0x12000, scoped, tag = 'internal scratch']
  %s0 = inlined_call_operand.vmem [shape: bf16[4,160,128], index: 0, kind: input, shape index: {}]
  %s1 = inlined_call_operand.vmem [shape: bf16[3,128,128], index: 1, kind: input, shape index: {}]
  %s2 = inlined_call_operand.vmem [shape: bf16[4,128,128], index: 2, kind: output, shape index: {0}]
  %s3 = inlined_call_operand.vmem [shape: f32[4,1,256], index: 3, kind: output, shape index: {1}]
  %4 = xla_tuple %s2, %s3
  %s5 = sld [smem:[#allocation0]]
  $region49: #{up_forward.3} parent=0
    _
  %s7 = ssub.s32 1, %s5
  %s8 = scalar_select 0, %s7, %s5
  loop: start=0, step=1, limit=6
  $region2: #{up_forward.3} parent=0 // loop_pre_header
    _
  $region3: #{up_forward.3} parent=0 // loop_header
    %s10 = sphi 0, %s14
    %p11 = scmp.ge.s32.totalorder %s10, 6
    %s20 = sphi 0, %s22
    %s23 = sphi 0, %s20
    %s24 = sphi 0, %s23
    %s40 = sphi 0, %s24
    %s44 = sphi 0, %s44
    %s46 = sphi 0, %s44
    %s47 = sphi 0, %s46
    %s61 = sphi 0, %s47
    %s67 = sphi 0, %s69
    %s70 = sphi 0, %s67
    %s71 = sphi 0, %s70
    %s87 = sphi 0, %s71
    %s93 = sphi 0, %s95
    %s96 = sphi 0, %s93
    %s97 = sphi 0, %s96
    %s113 = sphi 0, %s97
  $region4: #{up_forward.3} parent=0 // loop_header_branch
    %13 = sbr.rel (%p11) target = $region8
  $region5: #{up_forward.3} parent=0 // loop_body
    %s15 = ssub.s32 %s10, 1
    %s16 = ssub.s32 %s10, 2
    %s17 = sadd.s32 %s10, 1
    %s18 = ssub.s32 %s10, %s17
    %p19 = scmp.eq.s32.totalorder %s18, 0
    %s21 = sadd.s32 %s20, 1
    %s22 = scalar_select %p19, %s20, %s21
    %p25 = pneg %p19
    %p26 = scmp.eq.s32.totalorder %s10, 3
    %p27 = por %p25, %p26
    %p28 = scmp.ne.s32.totalorder %s20, %s23
    %p29 = scmp.eq.s32.totalorder %s10, 0
    %p30 = por %p28, %p29
    %p31 = scmp.ne.s32.totalorder %s20, %s23
    %p32 = scmp.eq.s32.totalorder %s15, 3
    %p33 = por %p31, %p32
    %p34 = scmp.ne.s32.totalorder %s23, %s24
    %p35 = scmp.eq.s32.totalorder %s15, 0
    %p36 = por %p34, %p35
    %p37 = scmp.ne.s32.totalorder %s23, %s24
    %p38 = scmp.eq.s32.totalorder %s16, 3
    %p39 = por %p37, %p38
    %p41 = scmp.ne.s32.totalorder %s24, %s40
    %p42 = scmp.eq.s32.totalorder %s16, 0
    %p43 = por %p41, %p42
    %s45 = sadd.s32 %s44, 1
    %p48 = scmp.eq.s32.totalorder %s10, 3
    %p49 = scmp.ne.s32.totalorder %s44, %s46
    %p50 = scmp.eq.s32.totalorder %s10, 0
    %p51 = por %p49, %p50
    %p52 = scmp.ne.s32.totalorder %s44, %s46
    %p53 = scmp.eq.s32.totalorder %s15, 3
    %p54 = por %p52, %p53
    %p55 = scmp.ne.s32.totalorder %s46, %s47
    %p56 = scmp.eq.s32.totalorder %s15, 0
    %p57 = por %p55, %p56
    %p58 = scmp.ne.s32.totalorder %s46, %s47
    %p59 = scmp.eq.s32.totalorder %s16, 3
    %p60 = por %p58, %p59
    %p62 = scmp.ne.s32.totalorder %s47, %s61
    %p63 = scmp.eq.s32.totalorder %s16, 0
    %p64 = por %p62, %p63
    %s65 = ssub.s32 %s10, %s17
    %p66 = scmp.eq.s32.totalorder %s65, 0
    %s68 = sadd.s32 %s67, 1
    %s69 = scalar_select %p66, %s67, %s68
    %p72 = pneg %p66
    %p73 = scmp.eq.s32.totalorder %s10, 3
    %p74 = por %p72, %p73
    %p75 = scmp.ne.s32.totalorder %s67, %s70
    %p76 = scmp.eq.s32.totalorder %s10, 0
    %p77 = por %p75, %p76
    %p78 = scmp.ne.s32.totalorder %s67, %s70
    %p79 = scmp.eq.s32.totalorder %s15, 3
    %p80 = por %p78, %p79
    %p81 = scmp.ne.s32.totalorder %s70, %s71
    %p82 = scmp.eq.s32.totalorder %s15, 0
    %p83 = por %p81, %p82
    %p84 = scmp.ne.s32.totalorder %s70, %s71
    %p85 = scmp.eq.s32.totalorder %s16, 3
    %p86 = por %p84, %p85
    %p88 = scmp.ne.s32.totalorder %s71, %s87
    %p89 = scmp.eq.s32.totalorder %s16, 0
    %p90 = por %p88, %p89
    %s91 = ssub.s32 %s10, %s17
    %p92 = scmp.eq.s32.totalorder %s91, 0
    %s94 = sadd.s32 %s93, 1
    %s95 = scalar_select %p92, %s93, %s94
    %p98 = pneg %p92
    %p99 = scmp.eq.s32.totalorder %s10, 3
    %p100 = por %p98, %p99
    %p101 = scmp.ne.s32.totalorder %s93, %s96
    %p102 = scmp.eq.s32.totalorder %s10, 0
    %p103 = por %p101, %p102
    %p104 = scmp.ne.s32.totalorder %s93, %s96
    %p105 = scmp.eq.s32.totalorder %s15, 3
    %p106 = por %p104, %p105
    %p107 = scmp.ne.s32.totalorder %s96, %s97
    %p108 = scmp.eq.s32.totalorder %s15, 0
    %p109 = por %p107, %p108
    %p110 = scmp.ne.s32.totalorder %s96, %s97
    %p111 = scmp.eq.s32.totalorder %s16, 3
    %p112 = por %p110, %p111
    %p114 = scmp.ne.s32.totalorder %s97, %s113
    %p115 = scmp.eq.s32.totalorder %s16, 0
    %p116 = por %p114, %p115
    %p117 = scmp.le.s32.totalorder 1, %s10
    %p118 = scmp.lt.s32.totalorder %s10, 5
    %p119 = pnand %p117, %p118
    %p120 = pneg %p119
    // Predicated region
    $region9: #{up_forward.3} parent=5 // pred_check
      _
    $region10: #{up_forward.3} parent=5 // pred_check_branch
      %122 = sbr.rel (%p119) target = $region12
    $region11: #{up_forward.3} parent=5 // pred_region
      %s123 = ssub.s32 %s10, 1
      // Predicated region
      $region13: #{up_forward.3} parent=11 // pred_check
        %p124 = pneg %p57
      $region14: #{up_forward.3} parent=11 // pred_check_branch
        %126 = sbr.rel (%p124) target = $region16
      $region15: #{up_forward.3} parent=11 // pred_region
        _
      $region16: #{up_forward.3} parent=11 // pred_fallthru
        _
    $region12: #{up_forward.3} parent=5 // pred_fallthru
      _
    %p127 = scmp.lt.s32.totalorder %s10, 4
    // Predicated region
    $region17: #{up_forward.3} parent=5 // pred_check
      %p128 = pneg %p127
    $region18: #{up_forward.3} parent=5 // pred_check_branch
      %130 = sbr.rel (%p128) target = $region20
    $region19: #{up_forward.3} parent=5 // pred_region
      // Predicated region
      $region21: #{up_forward.3} parent=19 // pred_check
        %p131 = pneg %p30
      $region22: #{up_forward.3} parent=19 // pred_check_branch
        %133 = sbr.rel (%p131) target = $region24
      $region23: #{up_forward.3} parent=19 // pred_region
        %p134 = scmp.lt.s32.totalorder %s10, 3
        %s135 = scalar_select %p134, %s10, 3
        %s136 = smul.addr %s135, 20
        %s137 = smul.addr %s136, 4
        %s138 = scalar_lea.vmem %s0, %s137
      $region24: #{up_forward.3} parent=19 // pred_fallthru
        _
    $region20: #{up_forward.3} parent=5 // pred_fallthru
      _
    %p139 = scmp.le.s32.totalorder 1, %s10
    %p140 = scmp.lt.s32.totalorder %s10, 5
    %p141 = pnand %p139, %p140
    %p142 = pneg %p141
    // Predicated region
    $region25: #{up_forward.3} parent=5 // pred_check
      _
    $region26: #{up_forward.3} parent=5 // pred_check_branch
      %144 = sbr.rel (%p141) target = $region28
    $region27: #{up_forward.3} parent=5 // pred_region
      %s145 = ssub.s32 %s10, 1
      %p146 = scmp.lt.s32.totalorder %s15, 3
      %s147 = scalar_select %p146, %s15, 3
      %s148 = smul.addr %s147, 20
      %s149 = smul.addr %s148, 4
      %s150 = scalar_lea.vmem %s0, %s149
      %p151 = pneg %p36
      %p152 = pneg %p33
      %p153 = pneg %p57
      %p154 = pneg %p54
      %p155 = pneg %p83
      %p156 = pneg %p80
      %p157 = scmp.lt.s32.totalorder %s15, 3
      %s158 = scalar_select %p157, %s15, 3
      %s159 = smul.addr %s158, 16
      %s160 = smul.addr %s159, 4
      %s161 = scalar_lea.vmem %s2, %s160
      %p162 = pneg %p109
      %p163 = pneg %p106
      %p164 = scmp.lt.s32.totalorder %s15, 3
      %s165 = scalar_select %p164, %s15, 3
      %s166 = smul.addr %s165, 2
      %s167 = scalar_lea.vmem %s3, %s166
      %p168 = scmp.lt.s32.totalorder %s15, 3
      %s169 = scalar_select %p168, %s15, 3
      %s170 = smul.addr %s169, 20
      %s171 = smul.addr %s170, 4
      %s172 = scalar_lea.vmem %s0, %s171
      %p173 = scmp.lt.s32.totalorder %s15, 3
      %s174 = scalar_select %p173, %s15, 3
      %s175 = smul.addr %s174, 16
      %s176 = smul.addr %s175, 4
      %s177 = scalar_lea.vmem %s2, %s176
      %p178 = scmp.lt.s32.totalorder %s15, 3
      %s179 = scalar_select %p178, %s15, 3
      %s180 = smul.addr %s179, 2
      %s181 = scalar_lea.vmem %s3, %s180
      %v183 = vld [vmem:[%s172] sm:$0xf]
      %v184 = vld [vmem:[%s172 + $0x4] sm:$0xf]
      %v185 = vld [vmem:[%s172 + $0x8] sm:$0xf]
      %v186 = vld [vmem:[%s172 + $0xc] sm:$0xf]
      %v187 = vld [vmem:[%s172 + $0x10] sm:$0xf]
      %v188 = vld [vmem:[%s172 + $0x14] sm:$0xf]
      %v189 = vld [vmem:[%s172 + $0x18] sm:$0xf]
      %v190 = vld [vmem:[%s172 + $0x1c] sm:$0xf]
      %v191 = vld [vmem:[%s172 + $0x20] sm:$0xf]
      %v192 = vld [vmem:[%s172 + $0x24] sm:$0xf]
      %v193 = vld [vmem:[%s172 + $0x28] sm:$0xf]
      %v194 = vld [vmem:[%s172 + $0x2c] sm:$0xf]
      %v195 = vld [vmem:[%s172 + $0x30] sm:$0xf]
      %v196 = vld [vmem:[%s172 + $0x34] sm:$0xf]
      %v197 = vld [vmem:[%s172 + $0x38] sm:$0xf]
      %v198 = vld [vmem:[%s172 + $0x3c] sm:$0xf]
      %v199 = vld [vmem:[%s1] sm:$0xf]
      %v200 = vld [vmem:[%s1 + $0x4] sm:$0xf]
      %v201 = vld [vmem:[%s1 + $0x8] sm:$0xf]
      %v202 = vld [vmem:[%s1 + $0xc] sm:$0xf]
      %v203 = vld [vmem:[%s1 + $0x10] sm:$0xf]
      %v204 = vld [vmem:[%s1 + $0x14] sm:$0xf]
      %v205 = vld [vmem:[%s1 + $0x18] sm:$0xf]
      %v206 = vld [vmem:[%s1 + $0x1c] sm:$0xf]
      %v207 = vld [vmem:[%s1 + $0x20] sm:$0xf]
      %v208 = vld [vmem:[%s1 + $0x24] sm:$0xf]
      %v209 = vld [vmem:[%s1 + $0x28] sm:$0xf]
      %v210 = vld [vmem:[%s1 + $0x2c] sm:$0xf]
      %v211 = vld [vmem:[%s1 + $0x30] sm:$0xf]
      %v212 = vld [vmem:[%s1 + $0x34] sm:$0xf]
      %v213 = vld [vmem:[%s1 + $0x38] sm:$0xf]
      %v214 = vld [vmem:[%s1 + $0x3c] sm:$0xf]
      %v215 = vld [vmem:[%s172 + $0x40] sm:$0xf]
      %v216 = vld [vmem:[%s172 + $0x44] sm:$0xf]
      %s217 = scalar_lea.vmem %s1, 64
      %v218 = vld [vmem:[%s217] sm:$0xf]
      %v219 = vld [vmem:[%s217 + $0x4] sm:$0xf]
      %v220 = vld [vmem:[%s217 + $0x8] sm:$0xf]
      %v221 = vld [vmem:[%s217 + $0xc] sm:$0xf]
      %v222 = vld [vmem:[%s217 + $0x10] sm:$0xf]
      %v223 = vld [vmem:[%s217 + $0x14] sm:$0xf]
      %v224 = vld [vmem:[%s217 + $0x18] sm:$0xf]
      %v225 = vld [vmem:[%s217 + $0x1c] sm:$0xf]
      %v226 = vld [vmem:[%s217 + $0x20] sm:$0xf]
      %v227 = vld [vmem:[%s217 + $0x24] sm:$0xf]
      %v228 = vld [vmem:[%s217 + $0x28] sm:$0xf]
      %v229 = vld [vmem:[%s217 + $0x2c] sm:$0xf]
      %v230 = vld [vmem:[%s217 + $0x30] sm:$0xf]
      %v231 = vld [vmem:[%s217 + $0x34] sm:$0xf]
      %v232 = vld [vmem:[%s217 + $0x38] sm:$0xf]
      %v233 = vld [vmem:[%s217 + $0x3c] sm:$0xf]
      %v250 = vunpack.c.l.b16 %v185
      %v251 = vunpack.c.l.b16 %v186
      %v252 = vunpack.c.l.b16 %v187
      %v253 = vunpack.c.l.b16 %v188
      %v254 = vunpack.c.l.b16 %v189
      %v255 = vunpack.c.l.b16 %v190
      %v256 = vunpack.c.l.b16 %v191
      %v257 = vunpack.c.l.b16 %v192
      %v258 = vunpack.c.l.b16 %v193
      %v259 = vunpack.c.l.b16 %v194
      %v260 = vunpack.c.l.b16 %v195
      %v261 = vunpack.c.l.b16 %v196
      %v262 = vunpack.c.l.b16 %v197
      %v263 = vunpack.c.l.b16 %v198
      %v264 = vunpack.c.l.b16 %v215
      %v265 = vunpack.c.l.b16 %v216
      %v266 = vpack.c.b16 %v251, %v250
      %v267 = vpack.c.b16 %v253, %v252
      %v268 = vpack.c.b16 %v255, %v254
      %v269 = vpack.c.b16 %v257, %v256
      %v270 = vpack.c.b16 %v259, %v258
      %v271 = vpack.c.b16 %v261, %v260
      %v272 = vpack.c.b16 %v263, %v262
      %v273 = vpack.c.b16 %v265, %v264
      %v298 = vunpack.c.l.b16 %v218
      %v299 = vunpack.c.l.b16 %v219
      %v300 = vunpack.c.l.b16 %v220
      %v301 = vunpack.c.l.b16 %v221
      %v302 = vunpack.c.l.b16 %v222
      %v303 = vunpack.c.l.b16 %v223
      %v304 = vunpack.c.l.b16 %v224
      %v305 = vunpack.c.l.b16 %v225
      %v306 = vunpack.c.l.b16 %v226
      %v307 = vunpack.c.l.b16 %v227
      %v308 = vunpack.c.l.b16 %v228
      %v309 = vunpack.c.l.b16 %v229
      %v310 = vunpack.c.l.b16 %v230
      %v311 = vunpack.c.l.b16 %v231
      %v312 = vunpack.c.l.b16 %v232
      %v313 = vunpack.c.l.b16 %v233
      %v314 = vpack.c.b16 %v299, %v298
      %v315 = vpack.c.b16 %v301, %v300
      %v316 = vpack.c.b16 %v303, %v302
      %v317 = vpack.c.b16 %v305, %v304
      %v318 = vpack.c.b16 %v307, %v306
      %v319 = vpack.c.b16 %v309, %v308
      %v320 = vpack.c.b16 %v311, %v310
      %v321 = vpack.c.b16 %v313, %v312
      %330 = vmatprep.subr.bf16.mxu0 0
      %331 = vmatpush1.bf16.msra.mxu0 %v314
      %332 = vmatprep.subr.bf16.mxu0 0
      %333 = vmatpush1.bf16.msra.mxu0 %v315
      %334 = vmatprep.subr.bf16.mxu0 0
      %335 = vmatpush1.bf16.msra.mxu0 %v316
      %336 = vmatprep.subr.bf16.mxu0 0
      %337 = vmatpush1.bf16.msra.mxu0 %v317
      %338 = vmatprep.subr.bf16.mxu0 0
      %339 = vmatpush1.bf16.msra.mxu0 %v318
      %340 = vmatprep.subr.bf16.mxu0 0
      %341 = vmatpush1.bf16.msra.mxu0 %v319
      %342 = vmatprep.subr.bf16.mxu0 0
      %343 = vmatpush1.bf16.msra.mxu0 %v320
      %344 = vmatprep.subr.bf16.mxu0 0
      %345 = vmatpush1.bf16.msra.mxu0 %v321
      %346 = vmatprep.subr.bf16.mxu0 0
      %347 = vmatpush1.bf16.msra.mxu0 0
      %348 = vmatprep.subr.bf16.mxu0 0
      %349 = vmatpush1.bf16.msra.mxu0 0
      %350 = vmatprep.subr.bf16.mxu0 0
      %351 = vmatpush1.bf16.msra.mxu0 0
      %352 = vmatprep.subr.bf16.mxu0 0
      %353 = vmatpush1.bf16.msra.mxu0 0
      %354 = vmatprep.subr.bf16.mxu0 0
      %355 = vmatpush1.bf16.msra.mxu0 0
      %356 = vmatprep.subr.bf16.mxu0 0
      %357 = vmatpush1.bf16.msra.mxu0 0
      %358 = vmatprep.subr.bf16.mxu0 0
      %359 = vmatpush1.bf16.msra.mxu0 0
      %360 = vmatprep.subr.bf16.mxu0 0
      %361 = vmatpush1.bf16.msra.mxu0 0
      %362 = vmatprep.mubr.bf16.mxu0 0
      %363 = vmatmul.mubr.bf16.gmra.mrb[0].mxu0 %v266
      %v364 = vpop.f32.mrb[0].mxu0
      %v365 = vadd.f32 0.0, %v364
      %v366 = vpop.f32.mrb[0].mxu0
      %v367 = vpop.f32.mrb[0].mxu0
      %v368 = vadd.f32 0.0, %v367
      %v369 = vpop.f32.mrb[0].mxu0
      %370 = vmatprep.mubr.bf16.mxu0 0
      %371 = vmatmul.mubr.bf16.gmra.mrb[0].mxu0 %v267
      %v372 = vpop.f32.mrb[0].mxu0
      %v373 = vadd.f32 0.0, %v372
      %v374 = vpop.f32.mrb[0].mxu0
      %v375 = vpop.f32.mrb[0].mxu0
      %v376 = vadd.f32 0.0, %v375
      %v377 = vpop.f32.mrb[0].mxu0
      %378 = vmatprep.mubr.bf16.mxu0 0
      %379 = vmatmul.mubr.bf16.gmra.mrb[0].mxu0 %v268
      %v380 = vpop.f32.mrb[0].mxu0
      %v381 = vadd.f32 0.0, %v380
      %v382 = vpop.f32.mrb[0].mxu0
      %v383 = vpop.f32.mrb[0].mxu0
      %v384 = vadd.f32 0.0, %v383
      %v385 = vpop.f32.mrb[0].mxu0
      %386 = vmatprep.mubr.bf16.mxu0 0
      %387 = vmatmul.mubr.bf16.gmra.mrb[0].mxu0 %v269
      %v388 = vpop.f32.mrb[0].mxu0
      %v389 = vadd.f32 0.0, %v388
      %v390 = vpop.f32.mrb[0].mxu0
      %v391 = vpop.f32.mrb[0].mxu0
      %v392 = vadd.f32 0.0, %v391
      %v393 = vpop.f32.mrb[0].mxu0
      %394 = vmatprep.mubr.bf16.mxu0 0
      %395 = vmatmul.mubr.bf16.gmra.mrb[0].mxu0 %v270
      %v396 = vpop.f32.mrb[0].mxu0
      %v397 = vadd.f32 0.0, %v396
      %v398 = vpop.f32.mrb[0].mxu0
      %v399 = vpop.f32.mrb[0].mxu0
      %v400 = vadd.f32 0.0, %v399
      %v401 = vpop.f32.mrb[0].mxu0
      %402 = vmatprep.mubr.bf16.mxu0 0
      %403 = vmatmul.mubr.bf16.gmra.mrb[0].mxu0 %v271
      %v404 = vpop.f32.mrb[0].mxu0
      %v405 = vadd.f32 0.0, %v404
      %v406 = vpop.f32.mrb[0].mxu0
      %v407 = vpop.f32.mrb[0].mxu0
      %v408 = vadd.f32 0.0, %v407
      %v409 = vpop.f32.mrb[0].mxu0
      %410 = vmatprep.mubr.bf16.mxu0 0
      %411 = vmatmul.mubr.bf16.gmra.mrb[0].mxu0 %v272
      %v412 = vpop.f32.mrb[0].mxu0
      %v413 = vadd.f32 0.0, %v412
      %v414 = vpop.f32.mrb[0].mxu0
      %v415 = vpop.f32.mrb[0].mxu0
      %v416 = vadd.f32 0.0, %v415
      %v417 = vpop.f32.mrb[0].mxu0
      %418 = vmatprep.mubr.bf16.mxu0 0
      %419 = vmatmul.mubr.bf16.gmra.mrb[0].mxu0 %v273
      %v420 = vpop.f32.mrb[0].mxu0
      %v421 = vadd.f32 0.0, %v420
      %v422 = vpop.f32.mrb[0].mxu0
      %v423 = vpop.f32.mrb[0].mxu0
      %v424 = vadd.f32 0.0, %v423
      %v425 = vpop.f32.mrb[0].mxu0
      %426 = vdwg.mxu0
      %v429 = vunpack.c.l.b16 %v183
      %v430 = vunpack.c.l.b16 %v184
      %v431 = vpack.c.b16 %v430, %v429
      %v449 = vunpack.c.l.b16 %v199
      %v450 = vunpack.c.l.b16 %v200
      %v451 = vunpack.c.l.b16 %v201
      %v452 = vunpack.c.l.b16 %v202
      %v453 = vunpack.c.l.b16 %v203
      %v454 = vunpack.c.l.b16 %v204
      %v455 = vunpack.c.l.b16 %v205
      %v456 = vunpack.c.l.b16 %v206
      %v457 = vunpack.c.l.b16 %v207
      %v458 = vunpack.c.l.b16 %v208
      %v459 = vunpack.c.l.b16 %v209
      %v460 = vunpack.c.l.b16 %v210
      %v461 = vunpack.c.l.b16 %v211
      %v462 = vunpack.c.l.b16 %v212
      %v463 = vunpack.c.l.b16 %v213
      %v464 = vunpack.c.l.b16 %v214
      %v465 = vpack.c.b16 %v450, %v449
      %v466 = vpack.c.b16 %v452, %v451
      %v467 = vpack.c.b16 %v454, %v453
      %v468 = vpack.c.b16 %v456, %v455
      %v469 = vpack.c.b16 %v458, %v457
      %v470 = vpack.c.b16 %v460, %v459
      %v471 = vpack.c.b16 %v462, %v461
      %v472 = vpack.c.b16 %v464, %v463
      %481 = vmatprep.subr.bf16.mxu0 0
      %482 = vmatpush1.bf16.msra.mxu0 %v465
      %483 = vmatprep.subr.bf16.mxu0 0
      %484 = vmatpush1.bf16.msra.mxu0 %v466
      %485 = vmatprep.subr.bf16.mxu0 0
      %486 = vmatpush1.bf16.msra.mxu0 %v467
      %487 = vmatprep.subr.bf16.mxu0 0
      %488 = vmatpush1.bf16.msra.mxu0 %v468
      %489 = vmatprep.subr.bf16.mxu0 0
      %490 = vmatpush1.bf16.msra.mxu0 %v469
      %491 = vmatprep.subr.bf16.mxu0 0
      %492 = vmatpush1.bf16.msra.mxu0 %v470
      %493 = vmatprep.subr.bf16.mxu0 0
      %494 = vmatpush1.bf16.msra.mxu0 %v471
      %495 = vmatprep.subr.bf16.mxu0 0
      %496 = vmatpush1.bf16.msra.mxu0 %v472
      %497 = vmatprep.subr.bf16.mxu0 0
      %498 = vmatpush1.bf16.msra.mxu0 0
      %499 = vmatprep.subr.bf16.mxu0 0
      %500 = vmatpush1.bf16.msra.mxu0 0
      %501 = vmatprep.subr.bf16.mxu0 0
      %502 = vmatpush1.bf16.msra.mxu0 0
      %503 = vmatprep.subr.bf16.mxu0 0
      %504 = vmatpush1.bf16.msra.mxu0 0
      %505 = vmatprep.subr.bf16.mxu0 0
      %506 = vmatpush1.bf16.msra.mxu0 0
      %507 = vmatprep.subr.bf16.mxu0 0
      %508 = vmatpush1.bf16.msra.mxu0 0
      %509 = vmatprep.subr.bf16.mxu0 0
      %510 = vmatpush1.bf16.msra.mxu0 0
      %511 = vmatprep.subr.bf16.mxu0 0
      %512 = vmatpush1.bf16.msra.mxu0 0
      %513 = vmatprep.mubr.bf16.mxu0 0
      %514 = vmatmul.mubr.bf16.gmra.mrb[0].mxu0 %v431
      %v515 = vpop.f32.mrb[0].mxu0
      %v516 = vadd.f32 %v365, %v515
      %v517 = vpop.f32.mrb[0].mxu0
      %v518 = vpop.f32.mrb[0].mxu0
      %v519 = vadd.f32 %v368, %v518
      %v520 = vpop.f32.mrb[0].mxu0
      %521 = vmatprep.mubr.bf16.mxu0 0
      %522 = vmatmul.mubr.bf16.gmra.mrb[0].mxu0 %v266
      %v523 = vpop.f32.mrb[0].mxu0
      %v524 = vadd.f32 %v373, %v523
      %v525 = vpop.f32.mrb[0].mxu0
      %v526 = vpop.f32.mrb[0].mxu0
      %v527 = vadd.f32 %v376, %v526
      %v528 = vpop.f32.mrb[0].mxu0
      %529 = vmatprep.mubr.bf16.mxu0 0
      %530 = vmatmul.mubr.bf16.gmra.mrb[0].mxu0 %v267
      %v531 = vpop.f32.mrb[0].mxu0
      %v532 = vadd.f32 %v381, %v531
      %v533 = vpop.f32.mrb[0].mxu0
      %v534 = vpop.f32.mrb[0].mxu0
      %v535 = vadd.f32 %v384, %v534
      %v536 = vpop.f32.mrb[0].mxu0
      %537 = vmatprep.mubr.bf16.mxu0 0
      %538 = vmatmul.mubr.bf16.gmra.mrb[0].mxu0 %v268
      %v539 = vpop.f32.mrb[0].mxu0
      %v540 = vadd.f32 %v389, %v539
      %v541 = vpop.f32.mrb[0].mxu0
      %v542 = vpop.f32.mrb[0].mxu0
      %v543 = vadd.f32 %v392, %v542
      %v544 = vpop.f32.mrb[0].mxu0
      %545 = vmatprep.mubr.bf16.mxu0 0
      %546 = vmatmul.mubr.bf16.gmra.mrb[0].mxu0 %v269
      %v547 = vpop.f32.mrb[0].mxu0
      %v548 = vadd.f32 %v397, %v547
      %v549 = vpop.f32.mrb[0].mxu0
      %v550 = vpop.f32.mrb[0].mxu0
      %v551 = vadd.f32 %v400, %v550
      %v552 = vpop.f32.mrb[0].mxu0
      %553 = vmatprep.mubr.bf16.mxu0 0
      %554 = vmatmul.mubr.bf16.gmra.mrb[0].mxu0 %v270
      %v555 = vpop.f32.mrb[0].mxu0
      %v556 = vadd.f32 %v405, %v555
      %v557 = vpop.f32.mrb[0].mxu0
      %v558 = vpop.f32.mrb[0].mxu0
      %v559 = vadd.f32 %v408, %v558
      %v560 = vpop.f32.mrb[0].mxu0
      %561 = vmatprep.mubr.bf16.mxu0 0
      %562 = vmatmul.mubr.bf16.gmra.mrb[0].mxu0 %v271
      %v563 = vpop.f32.mrb[0].mxu0
      %v564 = vadd.f32 %v413, %v563
      %v565 = vpop.f32.mrb[0].mxu0
      %v566 = vpop.f32.mrb[0].mxu0
      %v567 = vadd.f32 %v416, %v566
      %v568 = vpop.f32.mrb[0].mxu0
      %569 = vmatprep.mubr.bf16.mxu0 0
      %570 = vmatmul.mubr.bf16.gmra.mrb[0].mxu0 %v272
      %v571 = vpop.f32.mrb[0].mxu0
      %v572 = vadd.f32 %v421, %v571
      %v573 = vpop.f32.mrb[0].mxu0
      %v574 = vpop.f32.mrb[0].mxu0
      %v575 = vadd.f32 %v424, %v574
      %v576 = vpop.f32.mrb[0].mxu0
      %577 = vdwg.mxu0
      %v578 = vld [vmem:[%s172 + $0x10] sm:$0xf]
      %v579 = vld [vmem:[%s172 + $0x14] sm:$0xf]
      %v580 = vld [vmem:[%s172 + $0x18] sm:$0xf]
      %v581 = vld [vmem:[%s172 + $0x1c] sm:$0xf]
      %v582 = vld [vmem:[%s172 + $0x20] sm:$0xf]
      %v583 = vld [vmem:[%s172 + $0x24] sm:$0xf]
      %v584 = vld [vmem:[%s172 + $0x28] sm:$0xf]
      %v585 = vld [vmem:[%s172 + $0x2c] sm:$0xf]
      %v586 = vld [vmem:[%s172 + $0x30] sm:$0xf]
      %v587 = vld [vmem:[%s172 + $0x34] sm:$0xf]
      %v588 = vld [vmem:[%s172 + $0x38] sm:$0xf]
      %v589 = vld [vmem:[%s172 + $0x3c] sm:$0xf]
      %v590 = vld [vmem:[%s172 + $0x40] sm:$0xf]
      %v591 = vld [vmem:[%s172 + $0x44] sm:$0xf]
      %v592 = vld [vmem:[%s172 + $0x48] sm:$0xf]
      %v593 = vld [vmem:[%s172 + $0x4c] sm:$0xf]
      %s594 = scalar_lea.vmem %s1, 128
      %v595 = vld [vmem:[%s594] sm:$0xf]
      %v596 = vld [vmem:[%s594 + $0x4] sm:$0xf]
      %v597 = vld [vmem:[%s594 + $0x8] sm:$0xf]
      %v598 = vld [vmem:[%s594 + $0xc] sm:$0xf]
      %v599 = vld [vmem:[%s594 + $0x10] sm:$0xf]
      %v600 = vld [vmem:[%s594 + $0x14] sm:$0xf]
      %v601 = vld [vmem:[%s594 + $0x18] sm:$0xf]
      %v602 = vld [vmem:[%s594 + $0x1c] sm:$0xf]
      %v603 = vld [vmem:[%s594 + $0x20] sm:$0xf]
      %v604 = vld [vmem:[%s594 + $0x24] sm:$0xf]
      %v605 = vld [vmem:[%s594 + $0x28] sm:$0xf]
      %v606 = vld [vmem:[%s594 + $0x2c] sm:$0xf]
      %v607 = vld [vmem:[%s594 + $0x30] sm:$0xf]
      %v608 = vld [vmem:[%s594 + $0x34] sm:$0xf]
      %v609 = vld [vmem:[%s594 + $0x38] sm:$0xf]
      %v610 = vld [vmem:[%s594 + $0x3c] sm:$0xf]
      %v627 = vunpack.c.l.b16 %v578
      %v628 = vunpack.c.l.b16 %v579
      %v629 = vunpack.c.l.b16 %v580
      %v630 = vunpack.c.l.b16 %v581
      %v631 = vunpack.c.l.b16 %v582
      %v632 = vunpack.c.l.b16 %v583
      %v633 = vunpack.c.l.b16 %v584
      %v634 = vunpack.c.l.b16 %v585
      %v635 = vunpack.c.l.b16 %v586
      %v636 = vunpack.c.l.b16 %v587
      %v637 = vunpack.c.l.b16 %v588
      %v638 = vunpack.c.l.b16 %v589
      %v639 = vunpack.c.l.b16 %v590
      %v640 = vunpack.c.l.b16 %v591
      %v641 = vunpack.c.l.b16 %v592
      %v642 = vunpack.c.l.b16 %v593
      %v643 = vpack.c.b16 %v628, %v627
      %v644 = vpack.c.b16 %v630, %v629
      %v645 = vpack.c.b16 %v632, %v631
      %v646 = vpack.c.b16 %v634, %v633
      %v647 = vpack.c.b16 %v636, %v635
      %v648 = vpack.c.b16 %v638, %v637
      %v649 = vpack.c.b16 %v640, %v639
      %v650 = vpack.c.b16 %v642, %v641
      %v675 = vunpack.c.l.b16 %v595
      %v676 = vunpack.c.l.b16 %v596
      %v677 = vunpack.c.l.b16 %v597
      %v678 = vunpack.c.l.b16 %v598
      %v679 = vunpack.c.l.b16 %v599
      %v680 = vunpack.c.l.b16 %v600
      %v681 = vunpack.c.l.b16 %v601
      %v682 = vunpack.c.l.b16 %v602
      %v683 = vunpack.c.l.b16 %v603
      %v684 = vunpack.c.l.b16 %v604
      %v685 = vunpack.c.l.b16 %v605
      %v686 = vunpack.c.l.b16 %v606
      %v687 = vunpack.c.l.b16 %v607
      %v688 = vunpack.c.l.b16 %v608
      %v689 = vunpack.c.l.b16 %v609
      %v690 = vunpack.c.l.b16 %v610
      %v691 = vpack.c.b16 %v676, %v675
      %v692 = vpack.c.b16 %v678, %v677
      %v693 = vpack.c.b16 %v680, %v679
      %v694 = vpack.c.b16 %v682, %v681
      %v695 = vpack.c.b16 %v684, %v683
      %v696 = vpack.c.b16 %v686, %v685
      %v697 = vpack.c.b16 %v688, %v687
      %v698 = vpack.c.b16 %v690, %v689
      %707 = vmatprep.subr.bf16.mxu0 0
      %708 = vmatpush1.bf16.msra.mxu0 %v691
      %709 = vmatprep.subr.bf16.mxu0 0
      %710 = vmatpush1.bf16.msra.mxu0 %v692
      %711 = vmatprep.subr.bf16.mxu0 0
      %712 = vmatpush1.bf16.msra.mxu0 %v693
      %713 = vmatprep.subr.bf16.mxu0 0
      %714 = vmatpush1.bf16.msra.mxu0 %v694
      %715 = vmatprep.subr.bf16.mxu0 0
      %716 = vmatpush1.bf16.msra.mxu0 %v695
      %717 = vmatprep.subr.bf16.mxu0 0
      %718 = vmatpush1.bf16.msra.mxu0 %v696
      %719 = vmatprep.subr.bf16.mxu0 0
      %720 = vmatpush1.bf16.msra.mxu0 %v697
      %721 = vmatprep.subr.bf16.mxu0 0
      %722 = vmatpush1.bf16.msra.mxu0 %v698
      %723 = vmatprep.subr.bf16.mxu0 0
      %724 = vmatpush1.bf16.msra.mxu0 0
      %725 = vmatprep.subr.bf16.mxu0 0
      %726 = vmatpush1.bf16.msra.mxu0 0
      %727 = vmatprep.subr.bf16.mxu0 0
      %728 = vmatpush1.bf16.msra.mxu0 0
      %729 = vmatprep.subr.bf16.mxu0 0
      %730 = vmatpush1.bf16.msra.mxu0 0
      %731 = vmatprep.subr.bf16.mxu0 0
      %732 = vmatpush1.bf16.msra.mxu0 0
      %733 = vmatprep.subr.bf16.mxu0 0
      %734 = vmatpush1.bf16.msra.mxu0 0
      %735 = vmatprep.subr.bf16.mxu0 0
      %736 = vmatpush1.bf16.msra.mxu0 0
      %737 = vmatprep.subr.bf16.mxu0 0
      %738 = vmatpush1.bf16.msra.mxu0 0
      %739 = vmatprep.mubr.bf16.mxu0 0
      %740 = vmatmul.mubr.bf16.gmra.mrb[0].mxu0 %v643
      %v741 = vpop.f32.mrb[0].mxu0
      %v742 = vadd.f32 0.0, %v741
      %v743 = vpop.f32.mrb[0].mxu0
      %v744 = vpop.f32.mrb[0].mxu0
      %v745 = vadd.f32 0.0, %v744
      %v746 = vpop.f32.mrb[0].mxu0
      %747 = vmatprep.mubr.bf16.mxu0 0
      %748 = vmatmul.mubr.bf16.gmra.mrb[0].mxu0 %v644
      %v749 = vpop.f32.mrb[0].mxu0
      %v750 = vadd.f32 0.0, %v749
      %v751 = vpop.f32.mrb[0].mxu0
      %v752 = vpop.f32.mrb[0].mxu0
      %v753 = vadd.f32 0.0, %v752
      %v754 = vpop.f32.mrb[0].mxu0
      %755 = vmatprep.mubr.bf16.mxu0 0
      %756 = vmatmul.mubr.bf16.gmra.mrb[0].mxu0 %v645
      %v757 = vpop.f32.mrb[0].mxu0
      %v758 = vadd.f32 0.0, %v757
      %v759 = vpop.f32.mrb[0].mxu0
      %v760 = vpop.f32.mrb[0].mxu0
      %v761 = vadd.f32 0.0, %v760
      %v762 = vpop.f32.mrb[0].mxu0
      %763 = vmatprep.mubr.bf16.mxu0 0
      %764 = vmatmul.mubr.bf16.gmra.mrb[0].mxu0 %v646
      %v765 = vpop.f32.mrb[0].mxu0
      %v766 = vadd.f32 0.0, %v765
      %v767 = vpop.f32.mrb[0].mxu0
      %v768 = vpop.f32.mrb[0].mxu0
      %v769 = vadd.f32 0.0, %v768
      %v770 = vpop.f32.mrb[0].mxu0
      %771 = vmatprep.mubr.bf16.mxu0 0
      %772 = vmatmul.mubr.bf16.gmra.mrb[0].mxu0 %v647
      %v773 = vpop.f32.mrb[0].mxu0
      %v774 = vadd.f32 0.0, %v773
      %v775 = vpop.f32.mrb[0].mxu0
      %v776 = vpop.f32.mrb[0].mxu0
      %v777 = vadd.f32 0.0, %v776
      %v778 = vpop.f32.mrb[0].mxu0
      %779 = vmatprep.mubr.bf16.mxu0 0
      %780 = vmatmul.mubr.bf16.gmra.mrb[0].mxu0 %v648
      %v781 = vpop.f32.mrb[0].mxu0
      %v782 = vadd.f32 0.0, %v781
      %v783 = vpop.f32.mrb[0].mxu0
      %v784 = vpop.f32.mrb[0].mxu0
      %v785 = vadd.f32 0.0, %v784
      %v786 = vpop.f32.mrb[0].mxu0
      %787 = vmatprep.mubr.bf16.mxu0 0
      %788 = vmatmul.mubr.bf16.gmra.mrb[0].mxu0 %v649
      %v789 = vpop.f32.mrb[0].mxu0
      %v790 = vadd.f32 0.0, %v789
      %v791 = vpop.f32.mrb[0].mxu0
      %v792 = vpop.f32.mrb[0].mxu0
      %v793 = vadd.f32 0.0, %v792
      %v794 = vpop.f32.mrb[0].mxu0
      %795 = vmatprep.mubr.bf16.mxu0 0
      %796 = vmatmul.mubr.bf16.gmra.mrb[0].mxu0 %v650
      %v797 = vpop.f32.mrb[0].mxu0
      %v798 = vadd.f32 0.0, %v797
      %v799 = vpop.f32.mrb[0].mxu0
      %v800 = vpop.f32.mrb[0].mxu0
      %v801 = vadd.f32 0.0, %v800
      %v802 = vpop.f32.mrb[0].mxu0
      %803 = vdwg.mxu0
      %v804 = vadd.f32 %v516, %v742
      %v805 = vadd.f32 %v519, %v745
      %v806 = vadd.f32 %v524, %v750
      %v807 = vadd.f32 %v527, %v753
      %v808 = vadd.f32 %v532, %v758
      %v809 = vadd.f32 %v535, %v761
      %v810 = vadd.f32 %v540, %v766
      %v811 = vadd.f32 %v543, %v769
      %v812 = vadd.f32 %v548, %v774
      %v813 = vadd.f32 %v551, %v777
      %v814 = vadd.f32 %v556, %v782
      %v815 = vadd.f32 %v559, %v785
      %v816 = vadd.f32 %v564, %v790
      %v817 = vadd.f32 %v567, %v793
      %v818 = vadd.f32 %v572, %v798
      %v819 = vadd.f32 %v575, %v801
      %v820 = vpack.c.bf16 %v805, %v804
      %v821 = vpack.c.bf16 %v807, %v806
      %v822 = vpack.c.bf16 %v809, %v808
      %v823 = vpack.c.bf16 %v811, %v810
      %v824 = vpack.c.bf16 %v813, %v812
      %v825 = vpack.c.bf16 %v815, %v814
      %v826 = vpack.c.bf16 %v817, %v816
      %v827 = vpack.c.bf16 %v819, %v818
      %v836 = vunpack.c.l.b16 %v820
      %v837 = vunpack.c.h.b16 %v820
      %v838 = vunpack.c.l.b16 %v821
      %v839 = vunpack.c.h.b16 %v821
      %v840 = vunpack.c.l.b16 %v822
      %v841 = vunpack.c.h.b16 %v822
      %v842 = vunpack.c.l.b16 %v823
      %v843 = vunpack.c.h.b16 %v823
      %v844 = vunpack.c.l.b16 %v824
      %v845 = vunpack.c.h.b16 %v824
      %v846 = vunpack.c.l.b16 %v825
      %v847 = vunpack.c.h.b16 %v825
      %v848 = vunpack.c.l.b16 %v826
      %v849 = vunpack.c.h.b16 %v826
      %v850 = vunpack.c.l.b16 %v827
      %v851 = vunpack.c.h.b16 %v827
      %v852 = vpack.c.b16 %v836, %v836
      %v853 = vpack.c.b16 %v837, %v837
      %v854 = vpack.c.b16 %v838, %v838
      %v855 = vpack.c.b16 %v839, %v839
      %v856 = vpack.c.b16 %v840, %v840
      %v857 = vpack.c.b16 %v841, %v841
      %v858 = vpack.c.b16 %v842, %v842
      %v859 = vpack.c.b16 %v843, %v843
      %v860 = vpack.c.b16 %v844, %v844
      %v861 = vpack.c.b16 %v845, %v845
      %v862 = vpack.c.b16 %v846, %v846
      %v863 = vpack.c.b16 %v847, %v847
      %v864 = vpack.c.b16 %v848, %v848
      %v865 = vpack.c.b16 %v849, %v849
      %v866 = vpack.c.b16 %v850, %v850
      %v867 = vpack.c.b16 %v851, %v851
      %884 = vst [vmem:[%s177] sm:$0xf] %v852
      %885 = vst [vmem:[%s177 + $0x4] sm:$0xf] %v853
      %886 = vst [vmem:[%s177 + $0x8] sm:$0xf] %v854
      %887 = vst [vmem:[%s177 + $0xc] sm:$0xf] %v855
      %888 = vst [vmem:[%s177 + $0x10] sm:$0xf] %v856
      %889 = vst [vmem:[%s177 + $0x14] sm:$0xf] %v857
      %890 = vst [vmem:[%s177 + $0x18] sm:$0xf] %v858
      %891 = vst [vmem:[%s177 + $0x1c] sm:$0xf] %v859
      %892 = vst [vmem:[%s177 + $0x20] sm:$0xf] %v860
      %893 = vst [vmem:[%s177 + $0x24] sm:$0xf] %v861
      %894 = vst [vmem:[%s177 + $0x28] sm:$0xf] %v862
      %895 = vst [vmem:[%s177 + $0x2c] sm:$0xf] %v863
      %896 = vst [vmem:[%s177 + $0x30] sm:$0xf] %v864
      %897 = vst [vmem:[%s177 + $0x34] sm:$0xf] %v865
      %898 = vst [vmem:[%s177 + $0x38] sm:$0xf] %v866
      %899 = vst [vmem:[%s177 + $0x3c] sm:$0xf] %v867
      %v900 = vadd.f32 %v804, %v805
      %v901 = vadd.f32 %v900, %v806
      %v902 = vadd.f32 %v901, %v807
      %v903 = vadd.f32 %v902, %v808
      %v904 = vadd.f32 %v903, %v809
      %v905 = vadd.f32 %v904, %v810
      %v906 = vadd.f32 %v905, %v811
      %v907 = vadd.f32 %v906, %v812
      %v908 = vadd.f32 %v907, %v813
      %v909 = vadd.f32 %v908, %v814
      %v910 = vadd.f32 %v909, %v815
      %v911 = vadd.f32 %v910, %v816
      %v912 = vadd.f32 %v911, %v817
      %v913 = vadd.f32 %v912, %v818
      %v914 = vadd.f32 %v913, %v819
      %v915 = vrot.slane %v914, 4
      %v916 = vadd.f32 %v914, %v915
      %v917 = vrot.slane %v916, 2
      %v918 = vadd.f32 %v916, %v917
      %v919 = vrot.slane %v918, 1
      %v920 = vadd.f32 %v918, %v919
      %v921 = vmul.f32 %v804, %v804
      %v922 = vmul.f32 %v805, %v805
      %v923 = vmul.f32 %v806, %v806
      %v924 = vmul.f32 %v807, %v807
      %v925 = vmul.f32 %v808, %v808
      %v926 = vmul.f32 %v809, %v809
      %v927 = vmul.f32 %v810, %v810
      %v928 = vmul.f32 %v811, %v811
      %v929 = vmul.f32 %v812, %v812
      %v930 = vmul.f32 %v813, %v813
      %v931 = vmul.f32 %v814, %v814
      %v932 = vmul.f32 %v815, %v815
      %v933 = vmul.f32 %v816, %v816
      %v934 = vmul.f32 %v817, %v817
      %v935 = vmul.f32 %v818, %v818
      %v936 = vmul.f32 %v819, %v819
      %v937 = vadd.f32 %v921, %v922
      %v938 = vadd.f32 %v937, %v923
      %v939 = vadd.f32 %v938, %v924
      %v940 = vadd.f32 %v939, %v925
      %v941 = vadd.f32 %v940, %v926
      %v942 = vadd.f32 %v941, %v927
      %v943 = vadd.f32 %v942, %v928
      %v944 = vadd.f32 %v943, %v929
      %v945 = vadd.f32 %v944, %v930
      %v946 = vadd.f32 %v945, %v931
      %v947 = vadd.f32 %v946, %v932
      %v948 = vadd.f32 %v947, %v933
      %v949 = vadd.f32 %v948, %v934
      %v950 = vadd.f32 %v949, %v935
      %v951 = vadd.f32 %v950, %v936
      %v952 = vrot.slane %v951, 4
      %v953 = vadd.f32 %v951, %v952
      %v954 = vrot.slane %v953, 2
      %v955 = vadd.f32 %v953, %v954
      %v956 = vrot.slane %v955, 1
      %v957 = vadd.f32 %v955, %v956
      %v960 = vcombine.low %v920, %v957
      %v962 = vunpack.c.l.s4 1966171168
      %v963 = vunpack.c.0.s8 %v962
      %v964 = vlaneseq
      %v965 = vshrl.u32 %v964, 7
      %v966 = vsub.s32 %v963, %v965
      %v967 = vrot.slane %v960, %v966
      %v969 = vunpack.c.l.s4 1966171168
      %v970 = vunpack.c.0.s8 %v969
      %v971 = vlaneseq
      %v972 = vshrl.u32 %v971, 7
      %v973 = vsub.s32 %v970, %v972
      %v974 = vrot.slane %v967, %v973
      %v976 = vlaneseq
      %vm977 = vcmp.ge.s32.totalorder %v976, 0
      %vm978 = vcmp.lt.s32.totalorder %v976, 256
      %vm979 = vmand %vm977, %vm978
      %980 = vst.msk [vmem:[%s181] sm:$0x3] %vm979, %v974
      %p981 = scmp.lt.s32.totalorder %s15, 3
      %s982 = scalar_select %p981, %s15, 3
      %s983 = smul.addr %s982, 16
      %s984 = smul.addr %s983, 4
      %s985 = scalar_lea.vmem %s2, %s984
      %p986 = scmp.lt.s32.totalorder %s15, 3
      %s987 = scalar_select %p986, %s15, 3
      %s988 = smul.addr %s987, 2
      %s989 = scalar_lea.vmem %s3, %s988
      // Predicated region
      $region29: #{up_forward.3} parent=27 // pred_check
        %p990 = pneg %p80
      $region30: #{up_forward.3} parent=27 // pred_check_branch
        %992 = sbr.rel (%p990) target = $region32
      $region31: #{up_forward.3} parent=27 // pred_region
        _
      $region32: #{up_forward.3} parent=27 // pred_fallthru
        _
      // Predicated region
      $region33: #{up_forward.3} parent=27 // pred_check
        %p993 = pneg %p106
      $region34: #{up_forward.3} parent=27 // pred_check_branch
        %995 = sbr.rel (%p993) target = $region36
      $region35: #{up_forward.3} parent=27 // pred_region
        _
      $region36: #{up_forward.3} parent=27 // pred_fallthru
        _
    $region28: #{up_forward.3} parent=5 // pred_fallthru
      _
    %p996 = scmp.le.s32.totalorder 2, %s10
    // Predicated region
    $region37: #{up_forward.3} parent=5 // pred_check
      %p997 = pneg %p996
    $region38: #{up_forward.3} parent=5 // pred_check_branch
      %999 = sbr.rel (%p997) target = $region40
    $region39: #{up_forward.3} parent=5 // pred_region
      %s1000 = ssub.s32 %s10, 2
      // Predicated region
      $region41: #{up_forward.3} parent=39 // pred_check
        %p1001 = pneg %p86
      $region42: #{up_forward.3} parent=39 // pred_check_branch
        %1003 = sbr.rel (%p1001) target = $region44
      $region43: #{up_forward.3} parent=39 // pred_region
        %p1004 = scmp.lt.s32.totalorder %s16, 3
        %s1005 = scalar_select %p1004, %s16, 3
        %s1006 = smul.addr %s1005, 16
        %s1007 = smul.addr %s1006, 4
        %s1008 = scalar_lea.vmem %s2, %s1007
      $region44: #{up_forward.3} parent=39 // pred_fallthru
        _
      // Predicated region
      $region45: #{up_forward.3} parent=39 // pred_check
        %p1009 = pneg %p112
      $region46: #{up_forward.3} parent=39 // pred_check_branch
        %1011 = sbr.rel (%p1009) target = $region48
      $region47: #{up_forward.3} parent=39 // pred_region
        %p1012 = scmp.lt.s32.totalorder %s16, 3
        %s1013 = scalar_select %p1012, %s16, 3
        %s1014 = smul.addr %s1013, 2
        %s1015 = scalar_lea.vmem %s3, %s1014
      $region48: #{up_forward.3} parent=39 // pred_fallthru
        _
    $region40: #{up_forward.3} parent=5 // pred_fallthru
      _
  $region6: #{up_forward.3} parent=0 // loop_footer
    %s14 = sadd.s32 1, %s10
  $region7: #{up_forward.3} parent=0 // loop_footer_branch
    %9 = sbr.rel target = $region3
  $region8: #{up_forward.3} parent=0 // loop_exit
    _

// kernel: up_forward.4
$region0: #{up_forward.4}
  #allocation0 [shape = 'u32[]', space=smem, size = 0x4, offset = 0x4, fixed_abs, tag = 'smem constant byte address 0x4 - core index']
  #allocation1 [shape = 'u32[144,128]{1,0:T(1,128)}', space=vmem, size = 0x12000, scoped, tag = 'internal scratch']
  %s0 = inlined_call_operand.vmem [shape: bf16[4,160,128], index: 0, kind: input, shape index: {}]
  %s1 = inlined_call_operand.vmem [shape: bf16[3,128,128], index: 1, kind: input, shape index: {}]
  %s2 = inlined_call_operand.vmem [shape: f32[4,128,128], index: 2, kind: output, shape index: {0}]
  %s3 = inlined_call_operand.vmem [shape: f32[4,1,256], index: 3, kind: output, shape index: {1}]
  %4 = xla_tuple %s2, %s3
  %s5 = sld [smem:[#allocation0]]
  $region49: #{up_forward.4} parent=0
    _
  %s7 = ssub.s32 1, %s5
  %s8 = scalar_select 0, %s7, %s5
  loop: start=0, step=1, limit=6
  $region2: #{up_forward.4} parent=0 // loop_pre_header
    _
  $region3: #{up_forward.4} parent=0 // loop_header
    %s10 = sphi 0, %s14
    %p11 = scmp.ge.s32.totalorder %s10, 6
    %s20 = sphi 0, %s22
    %s23 = sphi 0, %s20
    %s24 = sphi 0, %s23
    %s40 = sphi 0, %s24
    %s44 = sphi 0, %s44
    %s46 = sphi 0, %s44
    %s47 = sphi 0, %s46
    %s61 = sphi 0, %s47
    %s67 = sphi 0, %s69
    %s70 = sphi 0, %s67
    %s71 = sphi 0, %s70
    %s87 = sphi 0, %s71
    %s93 = sphi 0, %s95
    %s96 = sphi 0, %s93
    %s97 = sphi 0, %s96
    %s113 = sphi 0, %s97
  $region4: #{up_forward.4} parent=0 // loop_header_branch
    %13 = sbr.rel (%p11) target = $region8
  $region5: #{up_forward.4} parent=0 // loop_body
    %s15 = ssub.s32 %s10, 1
    %s16 = ssub.s32 %s10, 2
    %s17 = sadd.s32 %s10, 1
    %s18 = ssub.s32 %s10, %s17
    %p19 = scmp.eq.s32.totalorder %s18, 0
    %s21 = sadd.s32 %s20, 1
    %s22 = scalar_select %p19, %s20, %s21
    %p25 = pneg %p19
    %p26 = scmp.eq.s32.totalorder %s10, 3
    %p27 = por %p25, %p26
    %p28 = scmp.ne.s32.totalorder %s20, %s23
    %p29 = scmp.eq.s32.totalorder %s10, 0
    %p30 = por %p28, %p29
    %p31 = scmp.ne.s32.totalorder %s20, %s23
    %p32 = scmp.eq.s32.totalorder %s15, 3
    %p33 = por %p31, %p32
    %p34 = scmp.ne.s32.totalorder %s23, %s24
    %p35 = scmp.eq.s32.totalorder %s15, 0
    %p36 = por %p34, %p35
    %p37 = scmp.ne.s32.totalorder %s23, %s24
    %p38 = scmp.eq.s32.totalorder %s16, 3
    %p39 = por %p37, %p38
    %p41 = scmp.ne.s32.totalorder %s24, %s40
    %p42 = scmp.eq.s32.totalorder %s16, 0
    %p43 = por %p41, %p42
    %s45 = sadd.s32 %s44, 1
    %p48 = scmp.eq.s32.totalorder %s10, 3
    %p49 = scmp.ne.s32.totalorder %s44, %s46
    %p50 = scmp.eq.s32.totalorder %s10, 0
    %p51 = por %p49, %p50
    %p52 = scmp.ne.s32.totalorder %s44, %s46
    %p53 = scmp.eq.s32.totalorder %s15, 3
    %p54 = por %p52, %p53
    %p55 = scmp.ne.s32.totalorder %s46, %s47
    %p56 = scmp.eq.s32.totalorder %s15, 0
    %p57 = por %p55, %p56
    %p58 = scmp.ne.s32.totalorder %s46, %s47
    %p59 = scmp.eq.s32.totalorder %s16, 3
    %p60 = por %p58, %p59
    %p62 = scmp.ne.s32.totalorder %s47, %s61
    %p63 = scmp.eq.s32.totalorder %s16, 0
    %p64 = por %p62, %p63
    %s65 = ssub.s32 %s10, %s17
    %p66 = scmp.eq.s32.totalorder %s65, 0
    %s68 = sadd.s32 %s67, 1
    %s69 = scalar_select %p66, %s67, %s68
    %p72 = pneg %p66
    %p73 = scmp.eq.s32.totalorder %s10, 3
    %p74 = por %p72, %p73
    %p75 = scmp.ne.s32.totalorder %s67, %s70
    %p76 = scmp.eq.s32.totalorder %s10, 0
    %p77 = por %p75, %p76
    %p78 = scmp.ne.s32.totalorder %s67, %s70
    %p79 = scmp.eq.s32.totalorder %s15, 3
    %p80 = por %p78, %p79
    %p81 = scmp.ne.s32.totalorder %s70, %s71
    %p82 = scmp.eq.s32.totalorder %s15, 0
    %p83 = por %p81, %p82
    %p84 = scmp.ne.s32.totalorder %s70, %s71
    %p85 = scmp.eq.s32.totalorder %s16, 3
    %p86 = por %p84, %p85
    %p88 = scmp.ne.s32.totalorder %s71, %s87
    %p89 = scmp.eq.s32.totalorder %s16, 0
    %p90 = por %p88, %p89
    %s91 = ssub.s32 %s10, %s17
    %p92 = scmp.eq.s32.totalorder %s91, 0
    %s94 = sadd.s32 %s93, 1
    %s95 = scalar_select %p92, %s93, %s94
    %p98 = pneg %p92
    %p99 = scmp.eq.s32.totalorder %s10, 3
    %p100 = por %p98, %p99
    %p101 = scmp.ne.s32.totalorder %s93, %s96
    %p102 = scmp.eq.s32.totalorder %s10, 0
    %p103 = por %p101, %p102
    %p104 = scmp.ne.s32.totalorder %s93, %s96
    %p105 = scmp.eq.s32.totalorder %s15, 3
    %p106 = por %p104, %p105
    %p107 = scmp.ne.s32.totalorder %s96, %s97
    %p108 = scmp.eq.s32.totalorder %s15, 0
    %p109 = por %p107, %p108
    %p110 = scmp.ne.s32.totalorder %s96, %s97
    %p111 = scmp.eq.s32.totalorder %s16, 3
    %p112 = por %p110, %p111
    %p114 = scmp.ne.s32.totalorder %s97, %s113
    %p115 = scmp.eq.s32.totalorder %s16, 0
    %p116 = por %p114, %p115
    %p117 = scmp.le.s32.totalorder 1, %s10
    %p118 = scmp.lt.s32.totalorder %s10, 5
    %p119 = pnand %p117, %p118
    %p120 = pneg %p119
    // Predicated region
    $region9: #{up_forward.4} parent=5 // pred_check
      _
    $region10: #{up_forward.4} parent=5 // pred_check_branch
      %122 = sbr.rel (%p119) target = $region12
    $region11: #{up_forward.4} parent=5 // pred_region
      %s123 = ssub.s32 %s10, 1
      // Predicated region
      $region13: #{up_forward.4} parent=11 // pred_check
        %p124 = pneg %p57
      $region14: #{up_forward.4} parent=11 // pred_check_branch
        %126 = sbr.rel (%p124) target = $region16
      $region15: #{up_forward.4} parent=11 // pred_region
        _
      $region16: #{up_forward.4} parent=11 // pred_fallthru
        _
    $region12: #{up_forward.4} parent=5 // pred_fallthru
      _
    %p127 = scmp.lt.s32.totalorder %s10, 4
    // Predicated region
    $region17: #{up_forward.4} parent=5 // pred_check
      %p128 = pneg %p127
    $region18: #{up_forward.4} parent=5 // pred_check_branch
      %130 = sbr.rel (%p128) target = $region20
    $region19: #{up_forward.4} parent=5 // pred_region
      // Predicated region
      $region21: #{up_forward.4} parent=19 // pred_check
        %p131 = pneg %p30
      $region22: #{up_forward.4} parent=19 // pred_check_branch
        %133 = sbr.rel (%p131) target = $region24
      $region23: #{up_forward.4} parent=19 // pred_region
        %p134 = scmp.lt.s32.totalorder %s10, 3
        %s135 = scalar_select %p134, %s10, 3
        %s136 = smul.addr %s135, 20
        %s137 = smul.addr %s136, 4
        %s138 = scalar_lea.vmem %s0, %s137
      $region24: #{up_forward.4} parent=19 // pred_fallthru
        _
    $region20: #{up_forward.4} parent=5 // pred_fallthru
      _
    %p139 = scmp.le.s32.totalorder 1, %s10
    %p140 = scmp.lt.s32.totalorder %s10, 5
    %p141 = pnand %p139, %p140
    %p142 = pneg %p141
    // Predicated region
    $region25: #{up_forward.4} parent=5 // pred_check
      _
    $region26: #{up_forward.4} parent=5 // pred_check_branch
      %144 = sbr.rel (%p141) target = $region28
    $region27: #{up_forward.4} parent=5 // pred_region
      %s145 = ssub.s32 %s10, 1
      %p146 = scmp.lt.s32.totalorder %s15, 3
      %s147 = scalar_select %p146, %s15, 3
      %s148 = smul.addr %s147, 20
      %s149 = smul.addr %s148, 4
      %s150 = scalar_lea.vmem %s0, %s149
      %p151 = pneg %p36
      %p152 = pneg %p33
      %p153 = pneg %p57
      %p154 = pneg %p54
      %p155 = pneg %p83
      %p156 = pneg %p80
      %p157 = scmp.lt.s32.totalorder %s15, 3
      %s158 = scalar_select %p157, %s15, 3
      %s159 = smul.addr %s158, 16
      %s160 = smul.addr %s159, 8
      %s161 = scalar_lea.vmem %s2, %s160
      %p162 = pneg %p109
      %p163 = pneg %p106
      %p164 = scmp.lt.s32.totalorder %s15, 3
      %s165 = scalar_select %p164, %s15, 3
      %s166 = smul.addr %s165, 2
      %s167 = scalar_lea.vmem %s3, %s166
      %p168 = scmp.lt.s32.totalorder %s15, 3
      %s169 = scalar_select %p168, %s15, 3
      %s170 = smul.addr %s169, 20
      %s171 = smul.addr %s170, 4
      %s172 = scalar_lea.vmem %s0, %s171
      %p173 = scmp.lt.s32.totalorder %s15, 3
      %s174 = scalar_select %p173, %s15, 3
      %s175 = smul.addr %s174, 16
      %s176 = smul.addr %s175, 8
      %s177 = scalar_lea.vmem %s2, %s176
      %p178 = scmp.lt.s32.totalorder %s15, 3
      %s179 = scalar_select %p178, %s15, 3
      %s180 = smul.addr %s179, 2
      %s181 = scalar_lea.vmem %s3, %s180
      %v183 = vld [vmem:[%s172] sm:$0xf]
      %v184 = vld [vmem:[%s172 + $0x4] sm:$0xf]
      %v185 = vld [vmem:[%s172 + $0x8] sm:$0xf]
      %v186 = vld [vmem:[%s172 + $0xc] sm:$0xf]
      %v187 = vld [vmem:[%s172 + $0x10] sm:$0xf]
      %v188 = vld [vmem:[%s172 + $0x14] sm:$0xf]
      %v189 = vld [vmem:[%s172 + $0x18] sm:$0xf]
      %v190 = vld [vmem:[%s172 + $0x1c] sm:$0xf]
      %v191 = vld [vmem:[%s172 + $0x20] sm:$0xf]
      %v192 = vld [vmem:[%s172 + $0x24] sm:$0xf]
      %v193 = vld [vmem:[%s172 + $0x28] sm:$0xf]
      %v194 = vld [vmem:[%s172 + $0x2c] sm:$0xf]
      %v195 = vld [vmem:[%s172 + $0x30] sm:$0xf]
      %v196 = vld [vmem:[%s172 + $0x34] sm:$0xf]
      %v197 = vld [vmem:[%s172 + $0x38] sm:$0xf]
      %v198 = vld [vmem:[%s172 + $0x3c] sm:$0xf]
      %v199 = vld [vmem:[%s1] sm:$0xf]
      %v200 = vld [vmem:[%s1 + $0x4] sm:$0xf]
      %v201 = vld [vmem:[%s1 + $0x8] sm:$0xf]
      %v202 = vld [vmem:[%s1 + $0xc] sm:$0xf]
      %v203 = vld [vmem:[%s1 + $0x10] sm:$0xf]
      %v204 = vld [vmem:[%s1 + $0x14] sm:$0xf]
      %v205 = vld [vmem:[%s1 + $0x18] sm:$0xf]
      %v206 = vld [vmem:[%s1 + $0x1c] sm:$0xf]
      %v207 = vld [vmem:[%s1 + $0x20] sm:$0xf]
      %v208 = vld [vmem:[%s1 + $0x24] sm:$0xf]
      %v209 = vld [vmem:[%s1 + $0x28] sm:$0xf]
      %v210 = vld [vmem:[%s1 + $0x2c] sm:$0xf]
      %v211 = vld [vmem:[%s1 + $0x30] sm:$0xf]
      %v212 = vld [vmem:[%s1 + $0x34] sm:$0xf]
      %v213 = vld [vmem:[%s1 + $0x38] sm:$0xf]
      %v214 = vld [vmem:[%s1 + $0x3c] sm:$0xf]
      %v215 = vld [vmem:[%s172 + $0x40] sm:$0xf]
      %v216 = vld [vmem:[%s172 + $0x44] sm:$0xf]
      %s217 = scalar_lea.vmem %s1, 64
      %v218 = vld [vmem:[%s217] sm:$0xf]
      %v219 = vld [vmem:[%s217 + $0x4] sm:$0xf]
      %v220 = vld [vmem:[%s217 + $0x8] sm:$0xf]
      %v221 = vld [vmem:[%s217 + $0xc] sm:$0xf]
      %v222 = vld [vmem:[%s217 + $0x10] sm:$0xf]
      %v223 = vld [vmem:[%s217 + $0x14] sm:$0xf]
      %v224 = vld [vmem:[%s217 + $0x18] sm:$0xf]
      %v225 = vld [vmem:[%s217 + $0x1c] sm:$0xf]
      %v226 = vld [vmem:[%s217 + $0x20] sm:$0xf]
      %v227 = vld [vmem:[%s217 + $0x24] sm:$0xf]
      %v228 = vld [vmem:[%s217 + $0x28] sm:$0xf]
      %v229 = vld [vmem:[%s217 + $0x2c] sm:$0xf]
      %v230 = vld [vmem:[%s217 + $0x30] sm:$0xf]
      %v231 = vld [vmem:[%s217 + $0x34] sm:$0xf]
      %v232 = vld [vmem:[%s217 + $0x38] sm:$0xf]
      %v233 = vld [vmem:[%s217 + $0x3c] sm:$0xf]
      %v250 = vunpack.c.l.b16 %v185
      %v251 = vunpack.c.l.b16 %v186
      %v252 = vunpack.c.l.b16 %v187
      %v253 = vunpack.c.l.b16 %v188
      %v254 = vunpack.c.l.b16 %v189
      %v255 = vunpack.c.l.b16 %v190
      %v256 = vunpack.c.l.b16 %v191
      %v257 = vunpack.c.l.b16 %v192
      %v258 = vunpack.c.l.b16 %v193
      %v259 = vunpack.c.l.b16 %v194
      %v260 = vunpack.c.l.b16 %v195
      %v261 = vunpack.c.l.b16 %v196
      %v262 = vunpack.c.l.b16 %v197
      %v263 = vunpack.c.l.b16 %v198
      %v264 = vunpack.c.l.b16 %v215
      %v265 = vunpack.c.l.b16 %v216
      %v266 = vpack.c.b16 %v251, %v250
      %v267 = vpack.c.b16 %v253, %v252
      %v268 = vpack.c.b16 %v255, %v254
      %v269 = vpack.c.b16 %v257, %v256
      %v270 = vpack.c.b16 %v259, %v258
      %v271 = vpack.c.b16 %v261, %v260
      %v272 = vpack.c.b16 %v263, %v262
      %v273 = vpack.c.b16 %v265, %v264
      %v298 = vunpack.c.l.b16 %v218
      %v299 = vunpack.c.l.b16 %v219
      %v300 = vunpack.c.l.b16 %v220
      %v301 = vunpack.c.l.b16 %v221
      %v302 = vunpack.c.l.b16 %v222
      %v303 = vunpack.c.l.b16 %v223
      %v304 = vunpack.c.l.b16 %v224
      %v305 = vunpack.c.l.b16 %v225
      %v306 = vunpack.c.l.b16 %v226
      %v307 = vunpack.c.l.b16 %v227
      %v308 = vunpack.c.l.b16 %v228
      %v309 = vunpack.c.l.b16 %v229
      %v310 = vunpack.c.l.b16 %v230
      %v311 = vunpack.c.l.b16 %v231
      %v312 = vunpack.c.l.b16 %v232
      %v313 = vunpack.c.l.b16 %v233
      %v314 = vpack.c.b16 %v299, %v298
      %v315 = vpack.c.b16 %v301, %v300
      %v316 = vpack.c.b16 %v303, %v302
      %v317 = vpack.c.b16 %v305, %v304
      %v318 = vpack.c.b16 %v307, %v306
      %v319 = vpack.c.b16 %v309, %v308
      %v320 = vpack.c.b16 %v311, %v310
      %v321 = vpack.c.b16 %v313, %v312
      %330 = vmatprep.subr.bf16.mxu0 0
      %331 = vmatpush1.bf16.msra.mxu0 %v314
      %332 = vmatprep.subr.bf16.mxu0 0
      %333 = vmatpush1.bf16.msra.mxu0 %v315
      %334 = vmatprep.subr.bf16.mxu0 0
      %335 = vmatpush1.bf16.msra.mxu0 %v316
      %336 = vmatprep.subr.bf16.mxu0 0
      %337 = vmatpush1.bf16.msra.mxu0 %v317
      %338 = vmatprep.subr.bf16.mxu0 0
      %339 = vmatpush1.bf16.msra.mxu0 %v318
      %340 = vmatprep.subr.bf16.mxu0 0
      %341 = vmatpush1.bf16.msra.mxu0 %v319
      %342 = vmatprep.subr.bf16.mxu0 0
      %343 = vmatpush1.bf16.msra.mxu0 %v320
      %344 = vmatprep.subr.bf16.mxu0 0
      %345 = vmatpush1.bf16.msra.mxu0 %v321
      %346 = vmatprep.subr.bf16.mxu0 0
      %347 = vmatpush1.bf16.msra.mxu0 0
      %348 = vmatprep.subr.bf16.mxu0 0
      %349 = vmatpush1.bf16.msra.mxu0 0
      %350 = vmatprep.subr.bf16.mxu0 0
      %351 = vmatpush1.bf16.msra.mxu0 0
      %352 = vmatprep.subr.bf16.mxu0 0
      %353 = vmatpush1.bf16.msra.mxu0 0
      %354 = vmatprep.subr.bf16.mxu0 0
      %355 = vmatpush1.bf16.msra.mxu0 0
      %356 = vmatprep.subr.bf16.mxu0 0
      %357 = vmatpush1.bf16.msra.mxu0 0
      %358 = vmatprep.subr.bf16.mxu0 0
      %359 = vmatpush1.bf16.msra.mxu0 0
      %360 = vmatprep.subr.bf16.mxu0 0
      %361 = vmatpush1.bf16.msra.mxu0 0
      %362 = vmatprep.mubr.bf16.mxu0 0
      %363 = vmatmul.mubr.bf16.gmra.mrb[0].mxu0 %v266
      %v364 = vpop.f32.mrb[0].mxu0
      %v365 = vadd.f32 0.0, %v364
      %v366 = vpop.f32.mrb[0].mxu0
      %v367 = vpop.f32.mrb[0].mxu0
      %v368 = vadd.f32 0.0, %v367
      %v369 = vpop.f32.mrb[0].mxu0
      %370 = vmatprep.mubr.bf16.mxu0 0
      %371 = vmatmul.mubr.bf16.gmra.mrb[0].mxu0 %v267
      %v372 = vpop.f32.mrb[0].mxu0
      %v373 = vadd.f32 0.0, %v372
      %v374 = vpop.f32.mrb[0].mxu0
      %v375 = vpop.f32.mrb[0].mxu0
      %v376 = vadd.f32 0.0, %v375
      %v377 = vpop.f32.mrb[0].mxu0
      %378 = vmatprep.mubr.bf16.mxu0 0
      %379 = vmatmul.mubr.bf16.gmra.mrb[0].mxu0 %v268
      %v380 = vpop.f32.mrb[0].mxu0
      %v381 = vadd.f32 0.0, %v380
      %v382 = vpop.f32.mrb[0].mxu0
      %v383 = vpop.f32.mrb[0].mxu0
      %v384 = vadd.f32 0.0, %v383
      %v385 = vpop.f32.mrb[0].mxu0
      %386 = vmatprep.mubr.bf16.mxu0 0
      %387 = vmatmul.mubr.bf16.gmra.mrb[0].mxu0 %v269
      %v388 = vpop.f32.mrb[0].mxu0
      %v389 = vadd.f32 0.0, %v388
      %v390 = vpop.f32.mrb[0].mxu0
      %v391 = vpop.f32.mrb[0].mxu0
      %v392 = vadd.f32 0.0, %v391
      %v393 = vpop.f32.mrb[0].mxu0
      %394 = vmatprep.mubr.bf16.mxu0 0
      %395 = vmatmul.mubr.bf16.gmra.mrb[0].mxu0 %v270
      %v396 = vpop.f32.mrb[0].mxu0
      %v397 = vadd.f32 0.0, %v396
      %v398 = vpop.f32.mrb[0].mxu0
      %v399 = vpop.f32.mrb[0].mxu0
      %v400 = vadd.f32 0.0, %v399
      %v401 = vpop.f32.mrb[0].mxu0
      %402 = vmatprep.mubr.bf16.mxu0 0
      %403 = vmatmul.mubr.bf16.gmra.mrb[0].mxu0 %v271
      %v404 = vpop.f32.mrb[0].mxu0
      %v405 = vadd.f32 0.0, %v404
      %v406 = vpop.f32.mrb[0].mxu0
      %v407 = vpop.f32.mrb[0].mxu0
      %v408 = vadd.f32 0.0, %v407
      %v409 = vpop.f32.mrb[0].mxu0
      %410 = vmatprep.mubr.bf16.mxu0 0
      %411 = vmatmul.mubr.bf16.gmra.mrb[0].mxu0 %v272
      %v412 = vpop.f32.mrb[0].mxu0
      %v413 = vadd.f32 0.0, %v412
      %v414 = vpop.f32.mrb[0].mxu0
      %v415 = vpop.f32.mrb[0].mxu0
      %v416 = vadd.f32 0.0, %v415
      %v417 = vpop.f32.mrb[0].mxu0
      %418 = vmatprep.mubr.bf16.mxu0 0
      %419 = vmatmul.mubr.bf16.gmra.mrb[0].mxu0 %v273
      %v420 = vpop.f32.mrb[0].mxu0
      %v421 = vadd.f32 0.0, %v420
      %v422 = vpop.f32.mrb[0].mxu0
      %v423 = vpop.f32.mrb[0].mxu0
      %v424 = vadd.f32 0.0, %v423
      %v425 = vpop.f32.mrb[0].mxu0
      %426 = vdwg.mxu0
      %v429 = vunpack.c.l.b16 %v183
      %v430 = vunpack.c.l.b16 %v184
      %v431 = vpack.c.b16 %v430, %v429
      %v449 = vunpack.c.l.b16 %v199
      %v450 = vunpack.c.l.b16 %v200
      %v451 = vunpack.c.l.b16 %v201
      %v452 = vunpack.c.l.b16 %v202
      %v453 = vunpack.c.l.b16 %v203
      %v454 = vunpack.c.l.b16 %v204
      %v455 = vunpack.c.l.b16 %v205
      %v456 = vunpack.c.l.b16 %v206
      %v457 = vunpack.c.l.b16 %v207
      %v458 = vunpack.c.l.b16 %v208
      %v459 = vunpack.c.l.b16 %v209
      %v460 = vunpack.c.l.b16 %v210
      %v461 = vunpack.c.l.b16 %v211
      %v462 = vunpack.c.l.b16 %v212
      %v463 = vunpack.c.l.b16 %v213
      %v464 = vunpack.c.l.b16 %v214
      %v465 = vpack.c.b16 %v450, %v449
      %v466 = vpack.c.b16 %v452, %v451
      %v467 = vpack.c.b16 %v454, %v453
      %v468 = vpack.c.b16 %v456, %v455
      %v469 = vpack.c.b16 %v458, %v457
      %v470 = vpack.c.b16 %v460, %v459
      %v471 = vpack.c.b16 %v462, %v461
      %v472 = vpack.c.b16 %v464, %v463
      %481 = vmatprep.subr.bf16.mxu0 0
      %482 = vmatpush1.bf16.msra.mxu0 %v465
      %483 = vmatprep.subr.bf16.mxu0 0
      %484 = vmatpush1.bf16.msra.mxu0 %v466
      %485 = vmatprep.subr.bf16.mxu0 0
      %486 = vmatpush1.bf16.msra.mxu0 %v467
      %487 = vmatprep.subr.bf16.mxu0 0
      %488 = vmatpush1.bf16.msra.mxu0 %v468
      %489 = vmatprep.subr.bf16.mxu0 0
      %490 = vmatpush1.bf16.msra.mxu0 %v469
      %491 = vmatprep.subr.bf16.mxu0 0
      %492 = vmatpush1.bf16.msra.mxu0 %v470
      %493 = vmatprep.subr.bf16.mxu0 0
      %494 = vmatpush1.bf16.msra.mxu0 %v471
      %495 = vmatprep.subr.bf16.mxu0 0
      %496 = vmatpush1.bf16.msra.mxu0 %v472
      %497 = vmatprep.subr.bf16.mxu0 0
      %498 = vmatpush1.bf16.msra.mxu0 0
      %499 = vmatprep.subr.bf16.mxu0 0
      %500 = vmatpush1.bf16.msra.mxu0 0
      %501 = vmatprep.subr.bf16.mxu0 0
      %502 = vmatpush1.bf16.msra.mxu0 0
      %503 = vmatprep.subr.bf16.mxu0 0
      %504 = vmatpush1.bf16.msra.mxu0 0
      %505 = vmatprep.subr.bf16.mxu0 0
      %506 = vmatpush1.bf16.msra.mxu0 0
      %507 = vmatprep.subr.bf16.mxu0 0
      %508 = vmatpush1.bf16.msra.mxu0 0
      %509 = vmatprep.subr.bf16.mxu0 0
      %510 = vmatpush1.bf16.msra.mxu0 0
      %511 = vmatprep.subr.bf16.mxu0 0
      %512 = vmatpush1.bf16.msra.mxu0 0
      %513 = vmatprep.mubr.bf16.mxu0 0
      %514 = vmatmul.mubr.bf16.gmra.mrb[0].mxu0 %v431
      %v515 = vpop.f32.mrb[0].mxu0
      %v516 = vadd.f32 %v365, %v515
      %v517 = vpop.f32.mrb[0].mxu0
      %v518 = vpop.f32.mrb[0].mxu0
      %v519 = vadd.f32 %v368, %v518
      %v520 = vpop.f32.mrb[0].mxu0
      %521 = vmatprep.mubr.bf16.mxu0 0
      %522 = vmatmul.mubr.bf16.gmra.mrb[0].mxu0 %v266
      %v523 = vpop.f32.mrb[0].mxu0
      %v524 = vadd.f32 %v373, %v523
      %v525 = vpop.f32.mrb[0].mxu0
      %v526 = vpop.f32.mrb[0].mxu0
      %v527 = vadd.f32 %v376, %v526
      %v528 = vpop.f32.mrb[0].mxu0
      %529 = vmatprep.mubr.bf16.mxu0 0
      %530 = vmatmul.mubr.bf16.gmra.mrb[0].mxu0 %v267
      %v531 = vpop.f32.mrb[0].mxu0
      %v532 = vadd.f32 %v381, %v531
      %v533 = vpop.f32.mrb[0].mxu0
      %v534 = vpop.f32.mrb[0].mxu0
      %v535 = vadd.f32 %v384, %v534
      %v536 = vpop.f32.mrb[0].mxu0
      %537 = vmatprep.mubr.bf16.mxu0 0
      %538 = vmatmul.mubr.bf16.gmra.mrb[0].mxu0 %v268
      %v539 = vpop.f32.mrb[0].mxu0
      %v540 = vadd.f32 %v389, %v539
      %v541 = vpop.f32.mrb[0].mxu0
      %v542 = vpop.f32.mrb[0].mxu0
      %v543 = vadd.f32 %v392, %v542
      %v544 = vpop.f32.mrb[0].mxu0
      %545 = vmatprep.mubr.bf16.mxu0 0
      %546 = vmatmul.mubr.bf16.gmra.mrb[0].mxu0 %v269
      %v547 = vpop.f32.mrb[0].mxu0
      %v548 = vadd.f32 %v397, %v547
      %v549 = vpop.f32.mrb[0].mxu0
      %v550 = vpop.f32.mrb[0].mxu0
      %v551 = vadd.f32 %v400, %v550
      %v552 = vpop.f32.mrb[0].mxu0
      %553 = vmatprep.mubr.bf16.mxu0 0
      %554 = vmatmul.mubr.bf16.gmra.mrb[0].mxu0 %v270
      %v555 = vpop.f32.mrb[0].mxu0
      %v556 = vadd.f32 %v405, %v555
      %v557 = vpop.f32.mrb[0].mxu0
      %v558 = vpop.f32.mrb[0].mxu0
      %v559 = vadd.f32 %v408, %v558
      %v560 = vpop.f32.mrb[0].mxu0
      %561 = vmatprep.mubr.bf16.mxu0 0
      %562 = vmatmul.mubr.bf16.gmra.mrb[0].mxu0 %v271
      %v563 = vpop.f32.mrb[0].mxu0
      %v564 = vadd.f32 %v413, %v563
      %v565 = vpop.f32.mrb[0].mxu0
      %v566 = vpop.f32.mrb[0].mxu0
      %v567 = vadd.f32 %v416, %v566
      %v568 = vpop.f32.mrb[0].mxu0
      %569 = vmatprep.mubr.bf16.mxu0 0
      %570 = vmatmul.mubr.bf16.gmra.mrb[0].mxu0 %v272
      %v571 = vpop.f32.mrb[0].mxu0
      %v572 = vadd.f32 %v421, %v571
      %v573 = vpop.f32.mrb[0].mxu0
      %v574 = vpop.f32.mrb[0].mxu0
      %v575 = vadd.f32 %v424, %v574
      %v576 = vpop.f32.mrb[0].mxu0
      %577 = vdwg.mxu0
      %v578 = vld [vmem:[%s172 + $0x10] sm:$0xf]
      %v579 = vld [vmem:[%s172 + $0x14] sm:$0xf]
      %v580 = vld [vmem:[%s172 + $0x18] sm:$0xf]
      %v581 = vld [vmem:[%s172 + $0x1c] sm:$0xf]
      %v582 = vld [vmem:[%s172 + $0x20] sm:$0xf]
      %v583 = vld [vmem:[%s172 + $0x24] sm:$0xf]
      %v584 = vld [vmem:[%s172 + $0x28] sm:$0xf]
      %v585 = vld [vmem:[%s172 + $0x2c] sm:$0xf]
      %v586 = vld [vmem:[%s172 + $0x30] sm:$0xf]
      %v587 = vld [vmem:[%s172 + $0x34] sm:$0xf]
      %v588 = vld [vmem:[%s172 + $0x38] sm:$0xf]
      %v589 = vld [vmem:[%s172 + $0x3c] sm:$0xf]
      %v590 = vld [vmem:[%s172 + $0x40] sm:$0xf]
      %v591 = vld [vmem:[%s172 + $0x44] sm:$0xf]
      %v592 = vld [vmem:[%s172 + $0x48] sm:$0xf]
      %v593 = vld [vmem:[%s172 + $0x4c] sm:$0xf]
      %s594 = scalar_lea.vmem %s1, 128
      %v595 = vld [vmem:[%s594] sm:$0xf]
      %v596 = vld [vmem:[%s594 + $0x4] sm:$0xf]
      %v597 = vld [vmem:[%s594 + $0x8] sm:$0xf]
      %v598 = vld [vmem:[%s594 + $0xc] sm:$0xf]
      %v599 = vld [vmem:[%s594 + $0x10] sm:$0xf]
      %v600 = vld [vmem:[%s594 + $0x14] sm:$0xf]
      %v601 = vld [vmem:[%s594 + $0x18] sm:$0xf]
      %v602 = vld [vmem:[%s594 + $0x1c] sm:$0xf]
      %v603 = vld [vmem:[%s594 + $0x20] sm:$0xf]
      %v604 = vld [vmem:[%s594 + $0x24] sm:$0xf]
      %v605 = vld [vmem:[%s594 + $0x28] sm:$0xf]
      %v606 = vld [vmem:[%s594 + $0x2c] sm:$0xf]
      %v607 = vld [vmem:[%s594 + $0x30] sm:$0xf]
      %v608 = vld [vmem:[%s594 + $0x34] sm:$0xf]
      %v609 = vld [vmem:[%s594 + $0x38] sm:$0xf]
      %v610 = vld [vmem:[%s594 + $0x3c] sm:$0xf]
      %v627 = vunpack.c.l.b16 %v578
      %v628 = vunpack.c.l.b16 %v579
      %v629 = vunpack.c.l.b16 %v580
      %v630 = vunpack.c.l.b16 %v581
      %v631 = vunpack.c.l.b16 %v582
      %v632 = vunpack.c.l.b16 %v583
      %v633 = vunpack.c.l.b16 %v584
      %v634 = vunpack.c.l.b16 %v585
      %v635 = vunpack.c.l.b16 %v586
      %v636 = vunpack.c.l.b16 %v587
      %v637 = vunpack.c.l.b16 %v588
      %v638 = vunpack.c.l.b16 %v589
      %v639 = vunpack.c.l.b16 %v590
      %v640 = vunpack.c.l.b16 %v591
      %v641 = vunpack.c.l.b16 %v592
      %v642 = vunpack.c.l.b16 %v593
      %v643 = vpack.c.b16 %v628, %v627
      %v644 = vpack.c.b16 %v630, %v629
      %v645 = vpack.c.b16 %v632, %v631
      %v646 = vpack.c.b16 %v634, %v633
      %v647 = vpack.c.b16 %v636, %v635
      %v648 = vpack.c.b16 %v638, %v637
      %v649 = vpack.c.b16 %v640, %v639
      %v650 = vpack.c.b16 %v642, %v641
      %v675 = vunpack.c.l.b16 %v595
      %v676 = vunpack.c.l.b16 %v596
      %v677 = vunpack.c.l.b16 %v597
      %v678 = vunpack.c.l.b16 %v598
      %v679 = vunpack.c.l.b16 %v599
      %v680 = vunpack.c.l.b16 %v600
      %v681 = vunpack.c.l.b16 %v601
      %v682 = vunpack.c.l.b16 %v602
      %v683 = vunpack.c.l.b16 %v603
      %v684 = vunpack.c.l.b16 %v604
      %v685 = vunpack.c.l.b16 %v605
      %v686 = vunpack.c.l.b16 %v606
      %v687 = vunpack.c.l.b16 %v607
      %v688 = vunpack.c.l.b16 %v608
      %v689 = vunpack.c.l.b16 %v609
      %v690 = vunpack.c.l.b16 %v610
      %v691 = vpack.c.b16 %v676, %v675
      %v692 = vpack.c.b16 %v678, %v677
      %v693 = vpack.c.b16 %v680, %v679
      %v694 = vpack.c.b16 %v682, %v681
      %v695 = vpack.c.b16 %v684, %v683
      %v696 = vpack.c.b16 %v686, %v685
      %v697 = vpack.c.b16 %v688, %v687
      %v698 = vpack.c.b16 %v690, %v689
      %707 = vmatprep.subr.bf16.mxu0 0
      %708 = vmatpush1.bf16.msra.mxu0 %v691
      %709 = vmatprep.subr.bf16.mxu0 0
      %710 = vmatpush1.bf16.msra.mxu0 %v692
      %711 = vmatprep.subr.bf16.mxu0 0
      %712 = vmatpush1.bf16.msra.mxu0 %v693
      %713 = vmatprep.subr.bf16.mxu0 0
      %714 = vmatpush1.bf16.msra.mxu0 %v694
      %715 = vmatprep.subr.bf16.mxu0 0
      %716 = vmatpush1.bf16.msra.mxu0 %v695
      %717 = vmatprep.subr.bf16.mxu0 0
      %718 = vmatpush1.bf16.msra.mxu0 %v696
      %719 = vmatprep.subr.bf16.mxu0 0
      %720 = vmatpush1.bf16.msra.mxu0 %v697
      %721 = vmatprep.subr.bf16.mxu0 0
      %722 = vmatpush1.bf16.msra.mxu0 %v698
      %723 = vmatprep.subr.bf16.mxu0 0
      %724 = vmatpush1.bf16.msra.mxu0 0
      %725 = vmatprep.subr.bf16.mxu0 0
      %726 = vmatpush1.bf16.msra.mxu0 0
      %727 = vmatprep.subr.bf16.mxu0 0
      %728 = vmatpush1.bf16.msra.mxu0 0
      %729 = vmatprep.subr.bf16.mxu0 0
      %730 = vmatpush1.bf16.msra.mxu0 0
      %731 = vmatprep.subr.bf16.mxu0 0
      %732 = vmatpush1.bf16.msra.mxu0 0
      %733 = vmatprep.subr.bf16.mxu0 0
      %734 = vmatpush1.bf16.msra.mxu0 0
      %735 = vmatprep.subr.bf16.mxu0 0
      %736 = vmatpush1.bf16.msra.mxu0 0
      %737 = vmatprep.subr.bf16.mxu0 0
      %738 = vmatpush1.bf16.msra.mxu0 0
      %739 = vmatprep.mubr.bf16.mxu0 0
      %740 = vmatmul.mubr.bf16.gmra.mrb[0].mxu0 %v643
      %v741 = vpop.f32.mrb[0].mxu0
      %v742 = vadd.f32 0.0, %v741
      %v743 = vpop.f32.mrb[0].mxu0
      %v744 = vpop.f32.mrb[0].mxu0
      %v745 = vadd.f32 0.0, %v744
      %v746 = vpop.f32.mrb[0].mxu0
      %747 = vmatprep.mubr.bf16.mxu0 0
      %748 = vmatmul.mubr.bf16.gmra.mrb[0].mxu0 %v644
      %v749 = vpop.f32.mrb[0].mxu0
      %v750 = vadd.f32 0.0, %v749
      %v751 = vpop.f32.mrb[0].mxu0
      %v752 = vpop.f32.mrb[0].mxu0
      %v753 = vadd.f32 0.0, %v752
      %v754 = vpop.f32.mrb[0].mxu0
      %755 = vmatprep.mubr.bf16.mxu0 0
      %756 = vmatmul.mubr.bf16.gmra.mrb[0].mxu0 %v645
      %v757 = vpop.f32.mrb[0].mxu0
      %v758 = vadd.f32 0.0, %v757
      %v759 = vpop.f32.mrb[0].mxu0
      %v760 = vpop.f32.mrb[0].mxu0
      %v761 = vadd.f32 0.0, %v760
      %v762 = vpop.f32.mrb[0].mxu0
      %763 = vmatprep.mubr.bf16.mxu0 0
      %764 = vmatmul.mubr.bf16.gmra.mrb[0].mxu0 %v646
      %v765 = vpop.f32.mrb[0].mxu0
      %v766 = vadd.f32 0.0, %v765
      %v767 = vpop.f32.mrb[0].mxu0
      %v768 = vpop.f32.mrb[0].mxu0
      %v769 = vadd.f32 0.0, %v768
      %v770 = vpop.f32.mrb[0].mxu0
      %771 = vmatprep.mubr.bf16.mxu0 0
      %772 = vmatmul.mubr.bf16.gmra.mrb[0].mxu0 %v647
      %v773 = vpop.f32.mrb[0].mxu0
      %v774 = vadd.f32 0.0, %v773
      %v775 = vpop.f32.mrb[0].mxu0
      %v776 = vpop.f32.mrb[0].mxu0
      %v777 = vadd.f32 0.0, %v776
      %v778 = vpop.f32.mrb[0].mxu0
      %779 = vmatprep.mubr.bf16.mxu0 0
      %780 = vmatmul.mubr.bf16.gmra.mrb[0].mxu0 %v648
      %v781 = vpop.f32.mrb[0].mxu0
      %v782 = vadd.f32 0.0, %v781
      %v783 = vpop.f32.mrb[0].mxu0
      %v784 = vpop.f32.mrb[0].mxu0
      %v785 = vadd.f32 0.0, %v784
      %v786 = vpop.f32.mrb[0].mxu0
      %787 = vmatprep.mubr.bf16.mxu0 0
      %788 = vmatmul.mubr.bf16.gmra.mrb[0].mxu0 %v649
      %v789 = vpop.f32.mrb[0].mxu0
      %v790 = vadd.f32 0.0, %v789
      %v791 = vpop.f32.mrb[0].mxu0
      %v792 = vpop.f32.mrb[0].mxu0
      %v793 = vadd.f32 0.0, %v792
      %v794 = vpop.f32.mrb[0].mxu0
      %795 = vmatprep.mubr.bf16.mxu0 0
      %796 = vmatmul.mubr.bf16.gmra.mrb[0].mxu0 %v650
      %v797 = vpop.f32.mrb[0].mxu0
      %v798 = vadd.f32 0.0, %v797
      %v799 = vpop.f32.mrb[0].mxu0
      %v800 = vpop.f32.mrb[0].mxu0
      %v801 = vadd.f32 0.0, %v800
      %v802 = vpop.f32.mrb[0].mxu0
      %803 = vdwg.mxu0
      %v804 = vadd.f32 %v516, %v742
      %v805 = vadd.f32 %v519, %v745
      %v806 = vadd.f32 %v524, %v750
      %v807 = vadd.f32 %v527, %v753
      %v808 = vadd.f32 %v532, %v758
      %v809 = vadd.f32 %v535, %v761
      %v810 = vadd.f32 %v540, %v766
      %v811 = vadd.f32 %v543, %v769
      %v812 = vadd.f32 %v548, %v774
      %v813 = vadd.f32 %v551, %v777
      %v814 = vadd.f32 %v556, %v782
      %v815 = vadd.f32 %v559, %v785
      %v816 = vadd.f32 %v564, %v790
      %v817 = vadd.f32 %v567, %v793
      %v818 = vadd.f32 %v572, %v798
      %v819 = vadd.f32 %v575, %v801
      %820 = vst [vmem:[%s177] sm:$0xff] %v804
      %821 = vst [vmem:[%s177 + $0x8] sm:$0xff] %v805
      %822 = vst [vmem:[%s177 + $0x10] sm:$0xff] %v806
      %823 = vst [vmem:[%s177 + $0x18] sm:$0xff] %v807
      %824 = vst [vmem:[%s177 + $0x20] sm:$0xff] %v808
      %825 = vst [vmem:[%s177 + $0x28] sm:$0xff] %v809
      %826 = vst [vmem:[%s177 + $0x30] sm:$0xff] %v810
      %827 = vst [vmem:[%s177 + $0x38] sm:$0xff] %v811
      %828 = vst [vmem:[%s177 + $0x40] sm:$0xff] %v812
      %829 = vst [vmem:[%s177 + $0x48] sm:$0xff] %v813
      %830 = vst [vmem:[%s177 + $0x50] sm:$0xff] %v814
      %831 = vst [vmem:[%s177 + $0x58] sm:$0xff] %v815
      %832 = vst [vmem:[%s177 + $0x60] sm:$0xff] %v816
      %833 = vst [vmem:[%s177 + $0x68] sm:$0xff] %v817
      %834 = vst [vmem:[%s177 + $0x70] sm:$0xff] %v818
      %835 = vst [vmem:[%s177 + $0x78] sm:$0xff] %v819
      %v836 = vadd.f32 %v804, %v805
      %v837 = vadd.f32 %v836, %v806
      %v838 = vadd.f32 %v837, %v807
      %v839 = vadd.f32 %v838, %v808
      %v840 = vadd.f32 %v839, %v809
      %v841 = vadd.f32 %v840, %v810
      %v842 = vadd.f32 %v841, %v811
      %v843 = vadd.f32 %v842, %v812
      %v844 = vadd.f32 %v843, %v813
      %v845 = vadd.f32 %v844, %v814
      %v846 = vadd.f32 %v845, %v815
      %v847 = vadd.f32 %v846, %v816
      %v848 = vadd.f32 %v847, %v817
      %v849 = vadd.f32 %v848, %v818
      %v850 = vadd.f32 %v849, %v819
      %v851 = vrot.slane %v850, 4
      %v852 = vadd.f32 %v850, %v851
      %v853 = vrot.slane %v852, 2
      %v854 = vadd.f32 %v852, %v853
      %v855 = vrot.slane %v854, 1
      %v856 = vadd.f32 %v854, %v855
      %v857 = vmul.f32 %v804, %v804
      %v858 = vmul.f32 %v805, %v805
      %v859 = vmul.f32 %v806, %v806
      %v860 = vmul.f32 %v807, %v807
      %v861 = vmul.f32 %v808, %v808
      %v862 = vmul.f32 %v809, %v809
      %v863 = vmul.f32 %v810, %v810
      %v864 = vmul.f32 %v811, %v811
      %v865 = vmul.f32 %v812, %v812
      %v866 = vmul.f32 %v813, %v813
      %v867 = vmul.f32 %v814, %v814
      %v868 = vmul.f32 %v815, %v815
      %v869 = vmul.f32 %v816, %v816
      %v870 = vmul.f32 %v817, %v817
      %v871 = vmul.f32 %v818, %v818
      %v872 = vmul.f32 %v819, %v819
      %v873 = vadd.f32 %v857, %v858
      %v874 = vadd.f32 %v873, %v859
      %v875 = vadd.f32 %v874, %v860
      %v876 = vadd.f32 %v875, %v861
      %v877 = vadd.f32 %v876, %v862
      %v878 = vadd.f32 %v877, %v863
      %v879 = vadd.f32 %v878, %v864
      %v880 = vadd.f32 %v879, %v865
      %v881 = vadd.f32 %v880, %v866
      %v882 = vadd.f32 %v881, %v867
      %v883 = vadd.f32 %v882, %v868
      %v884 = vadd.f32 %v883, %v869
      %v885 = vadd.f32 %v884, %v870
      %v886 = vadd.f32 %v885, %v871
      %v887 = vadd.f32 %v886, %v872
      %v888 = vrot.slane %v887, 4
      %v889 = vadd.f32 %v887, %v888
      %v890 = vrot.slane %v889, 2
      %v891 = vadd.f32 %v889, %v890
      %v892 = vrot.slane %v891, 1
      %v893 = vadd.f32 %v891, %v892
      %v896 = vcombine.low %v856, %v893
      %v898 = vunpack.c.l.s4 1966171168
      %v899 = vunpack.c.0.s8 %v898
      %v900 = vlaneseq
      %v901 = vshrl.u32 %v900, 7
      %v902 = vsub.s32 %v899, %v901
      %v903 = vrot.slane %v896, %v902
      %v905 = vunpack.c.l.s4 1966171168
      %v906 = vunpack.c.0.s8 %v905
      %v907 = vlaneseq
      %v908 = vshrl.u32 %v907, 7
      %v909 = vsub.s32 %v906, %v908
      %v910 = vrot.slane %v903, %v909
      %v912 = vlaneseq
      %vm913 = vcmp.ge.s32.totalorder %v912, 0
      %vm914 = vcmp.lt.s32.totalorder %v912, 256
      %vm915 = vmand %vm913, %vm914
      %916 = vst.msk [vmem:[%s181] sm:$0x3] %vm915, %v910
      %p917 = scmp.lt.s32.totalorder %s15, 3
      %s918 = scalar_select %p917, %s15, 3
      %s919 = smul.addr %s918, 16
      %s920 = smul.addr %s919, 8
      %s921 = scalar_lea.vmem %s2, %s920
      %p922 = scmp.lt.s32.totalorder %s15, 3
      %s923 = scalar_select %p922, %s15, 3
      %s924 = smul.addr %s923, 2
      %s925 = scalar_lea.vmem %s3, %s924
      // Predicated region
      $region29: #{up_forward.4} parent=27 // pred_check
        %p926 = pneg %p80
      $region30: #{up_forward.4} parent=27 // pred_check_branch
        %928 = sbr.rel (%p926) target = $region32
      $region31: #{up_forward.4} parent=27 // pred_region
        _
      $region32: #{up_forward.4} parent=27 // pred_fallthru
        _
      // Predicated region
      $region33: #{up_forward.4} parent=27 // pred_check
        %p929 = pneg %p106
      $region34: #{up_forward.4} parent=27 // pred_check_branch
        %931 = sbr.rel (%p929) target = $region36
      $region35: #{up_forward.4} parent=27 // pred_region
        _
      $region36: #{up_forward.4} parent=27 // pred_fallthru
        _
    $region28: #{up_forward.4} parent=5 // pred_fallthru
      _
    %p932 = scmp.le.s32.totalorder 2, %s10
    // Predicated region
    $region37: #{up_forward.4} parent=5 // pred_check
      %p933 = pneg %p932
    $region38: #{up_forward.4} parent=5 // pred_check_branch
      %935 = sbr.rel (%p933) target = $region40
    $region39: #{up_forward.4} parent=5 // pred_region
      %s936 = ssub.s32 %s10, 2
      // Predicated region
      $region41: #{up_forward.4} parent=39 // pred_check
        %p937 = pneg %p86
      $region42: #{up_forward.4} parent=39 // pred_check_branch
        %939 = sbr.rel (%p937) target = $region44
      $region43: #{up_forward.4} parent=39 // pred_region
        %p940 = scmp.lt.s32.totalorder %s16, 3
        %s941 = scalar_select %p940, %s16, 3
        %s942 = smul.addr %s941, 16
        %s943 = smul.addr %s942, 8
        %s944 = scalar_lea.vmem %s2, %s943
      $region44: #{up_forward.4} parent=39 // pred_fallthru
        _
      // Predicated region
      $region45: #{up_forward.4} parent=39 // pred_check
        %p945 = pneg %p112
      $region46: #{up_forward.4} parent=39 // pred_check_branch
        %947 = sbr.rel (%p945) target = $region48
      $region47: #{up_forward.4} parent=39 // pred_region
        %p948 = scmp.lt.s32.totalorder %s16, 3
        %s949 = scalar_select %p948, %s16, 3
        %s950 = smul.addr %s949, 2
        %s951 = scalar_lea.vmem %s3, %s950
      $region48: #{up_forward.4} parent=39 // pred_fallthru
        _
    $region40: #{up_forward.4} parent=5 // pred_fallthru
      _
  $region6: #{up_forward.4} parent=0 // loop_footer
    %s14 = sadd.s32 1, %s10
  $region7: #{up_forward.4} parent=0 // loop_footer_branch
    %9 = sbr.rel target = $region3
  $region8: #{up_forward.4} parent=0 // loop_exit
    _

// kernel: up_forward.5
$region0: #{up_forward.5}
  #allocation0 [shape = 'u32[]', space=smem, size = 0x4, offset = 0x4, fixed_abs, tag = 'smem constant byte address 0x4 - core index']
  #allocation1 [shape = 'u32[144,128]{1,0:T(1,128)}', space=vmem, size = 0x12000, scoped, tag = 'internal scratch']
  %s0 = inlined_call_operand.vmem [shape: f32[512,128], index: 0, kind: input, shape index: {}]
  %s1 = inlined_call_operand.vmem [shape: f32[1,128], index: 1, kind: input, shape index: {}]
  %s2 = inlined_call_operand.vmem [shape: f32[1,128], index: 2, kind: input, shape index: {}]
  %s3 = inlined_call_operand.vmem [shape: f32[512,128], index: 3, kind: output, shape index: {}]
  %s4 = sld [smem:[#allocation0]]
  $region45: #{up_forward.5} parent=0
    _
  %s6 = ssub.s32 1, %s4
  %s7 = scalar_select 0, %s6, %s4
  loop: start=0, step=1, limit=4
  $region2: #{up_forward.5} parent=0 // loop_pre_header
    _
  $region3: #{up_forward.5} parent=0 // loop_header
    %s9 = sphi 0, %s13
    %p10 = scmp.ge.s32.totalorder %s9, 4
    %s19 = sphi 0, %s21
    %s22 = sphi 0, %s19
    %s23 = sphi 0, %s22
    %s39 = sphi 0, %s23
    %s43 = sphi 0, %s43
    %s45 = sphi 0, %s43
    %s46 = sphi 0, %s45
    %s60 = sphi 0, %s46
    %s64 = sphi 0, %s64
    %s66 = sphi 0, %s64
    %s67 = sphi 0, %s66
    %s81 = sphi 0, %s67
    %s87 = sphi 0, %s89
    %s90 = sphi 0, %s87
    %s91 = sphi 0, %s90
    %s107 = sphi 0, %s91
  $region4: #{up_forward.5} parent=0 // loop_header_branch
    %12 = sbr.rel (%p10) target = $region8
  $region5: #{up_forward.5} parent=0 // loop_body
    %s14 = ssub.s32 %s9, 1
    %s15 = ssub.s32 %s9, 2
    %s16 = sadd.s32 %s9, 1
    %s17 = ssub.s32 %s9, %s16
    %p18 = scmp.eq.s32.totalorder %s17, 0
    %s20 = sadd.s32 %s19, 1
    %s21 = scalar_select %p18, %s19, %s20
    %p24 = pneg %p18
    %p25 = scmp.eq.s32.totalorder %s9, 1
    %p26 = por %p24, %p25
    %p27 = scmp.ne.s32.totalorder %s19, %s22
    %p28 = scmp.eq.s32.totalorder %s9, 0
    %p29 = por %p27, %p28
    %p30 = scmp.ne.s32.totalorder %s19, %s22
    %p31 = scmp.eq.s32.totalorder %s14, 1
    %p32 = por %p30, %p31
    %p33 = scmp.ne.s32.totalorder %s22, %s23
    %p34 = scmp.eq.s32.totalorder %s14, 0
    %p35 = por %p33, %p34
    %p36 = scmp.ne.s32.totalorder %s22, %s23
    %p37 = scmp.eq.s32.totalorder %s15, 1
    %p38 = por %p36, %p37
    %p40 = scmp.ne.s32.totalorder %s23, %s39
    %p41 = scmp.eq.s32.totalorder %s15, 0
    %p42 = por %p40, %p41
    %s44 = sadd.s32 %s43, 1
    %p47 = scmp.eq.s32.totalorder %s9, 1
    %p48 = scmp.ne.s32.totalorder %s43, %s45
    %p49 = scmp.eq.s32.totalorder %s9, 0
    %p50 = por %p48, %p49
    %p51 = scmp.ne.s32.totalorder %s43, %s45
    %p52 = scmp.eq.s32.totalorder %s14, 1
    %p53 = por %p51, %p52
    %p54 = scmp.ne.s32.totalorder %s45, %s46
    %p55 = scmp.eq.s32.totalorder %s14, 0
    %p56 = por %p54, %p55
    %p57 = scmp.ne.s32.totalorder %s45, %s46
    %p58 = scmp.eq.s32.totalorder %s15, 1
    %p59 = por %p57, %p58
    %p61 = scmp.ne.s32.totalorder %s46, %s60
    %p62 = scmp.eq.s32.totalorder %s15, 0
    %p63 = por %p61, %p62
    %s65 = sadd.s32 %s64, 1
    %p68 = scmp.eq.s32.totalorder %s9, 1
    %p69 = scmp.ne.s32.totalorder %s64, %s66
    %p70 = scmp.eq.s32.totalorder %s9, 0
    %p71 = por %p69, %p70
    %p72 = scmp.ne.s32.totalorder %s64, %s66
    %p73 = scmp.eq.s32.totalorder %s14, 1
    %p74 = por %p72, %p73
    %p75 = scmp.ne.s32.totalorder %s66, %s67
    %p76 = scmp.eq.s32.totalorder %s14, 0
    %p77 = por %p75, %p76
    %p78 = scmp.ne.s32.totalorder %s66, %s67
    %p79 = scmp.eq.s32.totalorder %s15, 1
    %p80 = por %p78, %p79
    %p82 = scmp.ne.s32.totalorder %s67, %s81
    %p83 = scmp.eq.s32.totalorder %s15, 0
    %p84 = por %p82, %p83
    %s85 = ssub.s32 %s9, %s16
    %p86 = scmp.eq.s32.totalorder %s85, 0
    %s88 = sadd.s32 %s87, 1
    %s89 = scalar_select %p86, %s87, %s88
    %p92 = pneg %p86
    %p93 = scmp.eq.s32.totalorder %s9, 1
    %p94 = por %p92, %p93
    %p95 = scmp.ne.s32.totalorder %s87, %s90
    %p96 = scmp.eq.s32.totalorder %s9, 0
    %p97 = por %p95, %p96
    %p98 = scmp.ne.s32.totalorder %s87, %s90
    %p99 = scmp.eq.s32.totalorder %s14, 1
    %p100 = por %p98, %p99
    %p101 = scmp.ne.s32.totalorder %s90, %s91
    %p102 = scmp.eq.s32.totalorder %s14, 0
    %p103 = por %p101, %p102
    %p104 = scmp.ne.s32.totalorder %s90, %s91
    %p105 = scmp.eq.s32.totalorder %s15, 1
    %p106 = por %p104, %p105
    %p108 = scmp.ne.s32.totalorder %s91, %s107
    %p109 = scmp.eq.s32.totalorder %s15, 0
    %p110 = por %p108, %p109
    %p111 = scmp.le.s32.totalorder 1, %s9
    %p112 = scmp.lt.s32.totalorder %s9, 3
    %p113 = pnand %p111, %p112
    %p114 = pneg %p113
    // Predicated region
    $region9: #{up_forward.5} parent=5 // pred_check
      _
    $region10: #{up_forward.5} parent=5 // pred_check_branch
      %116 = sbr.rel (%p113) target = $region12
    $region11: #{up_forward.5} parent=5 // pred_region
      %s117 = ssub.s32 %s9, 1
      // Predicated region
      $region13: #{up_forward.5} parent=11 // pred_check
        %p118 = pneg %p56
      $region14: #{up_forward.5} parent=11 // pred_check_branch
        %120 = sbr.rel (%p118) target = $region16
      $region15: #{up_forward.5} parent=11 // pred_region
        _
      $region16: #{up_forward.5} parent=11 // pred_fallthru
        _
      // Predicated region
      $region17: #{up_forward.5} parent=11 // pred_check
        %p121 = pneg %p77
      $region18: #{up_forward.5} parent=11 // pred_check_branch
        %123 = sbr.rel (%p121) target = $region20
      $region19: #{up_forward.5} parent=11 // pred_region
        _
      $region20: #{up_forward.5} parent=11 // pred_fallthru
        _
    $region12: #{up_forward.5} parent=5 // pred_fallthru
      _
    %p124 = scmp.lt.s32.totalorder %s9, 2
    // Predicated region
    $region21: #{up_forward.5} parent=5 // pred_check
      %p125 = pneg %p124
    $region22: #{up_forward.5} parent=5 // pred_check_branch
      %127 = sbr.rel (%p125) target = $region24
    $region23: #{up_forward.5} parent=5 // pred_region
      // Predicated region
      $region25: #{up_forward.5} parent=23 // pred_check
        %p128 = pneg %p29
      $region26: #{up_forward.5} parent=23 // pred_check_branch
        %130 = sbr.rel (%p128) target = $region28
      $region27: #{up_forward.5} parent=23 // pred_region
        %s131 = smul.u32 32, %s9
        %p132 = scmp.lt.s32.totalorder %s131, 63
        %s133 = scalar_select %p132, %s131, 63
        %s134 = smul.addr %s133, 8
        %s135 = scalar_lea.vmem %s0, %s134
        %s136 = smul.u32 32, %s9
      $region28: #{up_forward.5} parent=23 // pred_fallthru
        _
    $region24: #{up_forward.5} parent=5 // pred_fallthru
      _
    %p137 = scmp.le.s32.totalorder 1, %s9
    %p138 = scmp.lt.s32.totalorder %s9, 3
    %p139 = pnand %p137, %p138
    %p140 = pneg %p139
    // Predicated region
    $region29: #{up_forward.5} parent=5 // pred_check
      _
    $region30: #{up_forward.5} parent=5 // pred_check_branch
      %142 = sbr.rel (%p139) target = $region32
    $region31: #{up_forward.5} parent=5 // pred_region
      %s143 = ssub.s32 %s9, 1
      %s144 = smul.u32 32, %s14
      %p145 = scmp.lt.s32.totalorder %s144, 63
      %s146 = scalar_select %p145, %s144, 63
      %s147 = smul.addr %s146, 8
      %s148 = scalar_lea.vmem %s0, %s147
      %p149 = pneg %p35
      %p150 = pneg %p32
      %p151 = pneg %p56
      %p152 = pneg %p53
      %p153 = pneg %p77
      %p154 = pneg %p74
      %p155 = pneg %p103
      %p156 = pneg %p100
      %s157 = smul.u32 32, %s14
      %p158 = scmp.lt.s32.totalorder %s157, 63
      %s159 = scalar_select %p158, %s157, 63
      %s160 = smul.addr %s159, 8
      %s161 = scalar_lea.vmem %s3, %s160
      %s162 = smul.u32 32, %s14
      %p163 = scmp.lt.s32.totalorder %s162, 63
      %s164 = scalar_select %p163, %s162, 63
      %s165 = smul.addr %s164, 8
      %s166 = scalar_lea.vmem %s0, %s165
      %s167 = smul.u32 32, %s14
      %s168 = smul.u32 32, %s14
      %p169 = scmp.lt.s32.totalorder %s168, 63
      %s170 = scalar_select %p169, %s168, 63
      %s171 = smul.addr %s170, 8
      %s172 = scalar_lea.vmem %s3, %s171
      %s173 = smul.u32 32, %s14
      %v174 = vld [vmem:[%s166] sm:$0xff]
      %v175 = vld [vmem:[%s166 + $0x8] sm:$0xff]
      %v176 = vld [vmem:[%s166 + $0x10] sm:$0xff]
      %v177 = vld [vmem:[%s166 + $0x18] sm:$0xff]
      %v178 = vld [vmem:[%s166 + $0x20] sm:$0xff]
      %v179 = vld [vmem:[%s166 + $0x28] sm:$0xff]
      %v180 = vld [vmem:[%s166 + $0x30] sm:$0xff]
      %v181 = vld [vmem:[%s166 + $0x38] sm:$0xff]
      %v182 = vld [vmem:[%s166 + $0x40] sm:$0xff]
      %v183 = vld [vmem:[%s166 + $0x48] sm:$0xff]
      %v184 = vld [vmem:[%s166 + $0x50] sm:$0xff]
      %v185 = vld [vmem:[%s166 + $0x58] sm:$0xff]
      %v186 = vld [vmem:[%s166 + $0x60] sm:$0xff]
      %v187 = vld [vmem:[%s166 + $0x68] sm:$0xff]
      %v188 = vld [vmem:[%s166 + $0x70] sm:$0xff]
      %v189 = vld [vmem:[%s166 + $0x78] sm:$0xff]
      %v190 = vld [vmem:[%s166 + $0x80] sm:$0xff]
      %v191 = vld [vmem:[%s166 + $0x88] sm:$0xff]
      %v192 = vld [vmem:[%s166 + $0x90] sm:$0xff]
      %v193 = vld [vmem:[%s166 + $0x98] sm:$0xff]
      %v194 = vld [vmem:[%s166 + $0xa0] sm:$0xff]
      %v195 = vld [vmem:[%s166 + $0xa8] sm:$0xff]
      %v196 = vld [vmem:[%s166 + $0xb0] sm:$0xff]
      %v197 = vld [vmem:[%s166 + $0xb8] sm:$0xff]
      %v198 = vld [vmem:[%s166 + $0xc0] sm:$0xff]
      %v199 = vld [vmem:[%s166 + $0xc8] sm:$0xff]
      %v200 = vld [vmem:[%s166 + $0xd0] sm:$0xff]
      %v201 = vld [vmem:[%s166 + $0xd8] sm:$0xff]
      %v202 = vld [vmem:[%s166 + $0xe0] sm:$0xff]
      %v203 = vld [vmem:[%s166 + $0xe8] sm:$0xff]
      %v204 = vld [vmem:[%s166 + $0xf0] sm:$0xff]
      %v205 = vld [vmem:[%s166 + $0xf8] sm:$0xff]
      %v206 = vld [vmem:[%s1] sm:$0x1]
      %v208 = vlaneseq
      %v209 = vshrl.u32 %v208, 7
      %v210 = vsub.s32 0, %v209
      %v211 = vrot.slane %v206, %v210
      %v213 = vmul.f32 %v174, %v211
      %v214 = vmul.f32 %v175, %v211
      %v215 = vmul.f32 %v176, %v211
      %v216 = vmul.f32 %v177, %v211
      %v217 = vmul.f32 %v178, %v211
      %v218 = vmul.f32 %v179, %v211
      %v219 = vmul.f32 %v180, %v211
      %v220 = vmul.f32 %v181, %v211
      %v221 = vmul.f32 %v182, %v211
      %v222 = vmul.f32 %v183, %v211
      %v223 = vmul.f32 %v184, %v211
      %v224 = vmul.f32 %v185, %v211
      %v225 = vmul.f32 %v186, %v211
      %v226 = vmul.f32 %v187, %v211
      %v227 = vmul.f32 %v188, %v211
      %v228 = vmul.f32 %v189, %v211
      %v229 = vmul.f32 %v190, %v211
      %v230 = vmul.f32 %v191, %v211
      %v231 = vmul.f32 %v192, %v211
      %v232 = vmul.f32 %v193, %v211
      %v233 = vmul.f32 %v194, %v211
      %v234 = vmul.f32 %v195, %v211
      %v235 = vmul.f32 %v196, %v211
      %v236 = vmul.f32 %v197, %v211
      %v237 = vmul.f32 %v198, %v211
      %v238 = vmul.f32 %v199, %v211
      %v239 = vmul.f32 %v200, %v211
      %v240 = vmul.f32 %v201, %v211
      %v241 = vmul.f32 %v202, %v211
      %v242 = vmul.f32 %v203, %v211
      %v243 = vmul.f32 %v204, %v211
      %v244 = vmul.f32 %v205, %v211
      %v245 = vld [vmem:[%s2] sm:$0x1]
      %v247 = vlaneseq
      %v248 = vshrl.u32 %v247, 7
      %v249 = vsub.s32 0, %v248
      %v250 = vrot.slane %v245, %v249
      %v252 = vadd.f32 %v213, %v250
      %v253 = vadd.f32 %v214, %v250
      %v254 = vadd.f32 %v215, %v250
      %v255 = vadd.f32 %v216, %v250
      %v256 = vadd.f32 %v217, %v250
      %v257 = vadd.f32 %v218, %v250
      %v258 = vadd.f32 %v219, %v250
      %v259 = vadd.f32 %v220, %v250
      %v260 = vadd.f32 %v221, %v250
      %v261 = vadd.f32 %v222, %v250
      %v262 = vadd.f32 %v223, %v250
      %v263 = vadd.f32 %v224, %v250
      %v264 = vadd.f32 %v225, %v250
      %v265 = vadd.f32 %v226, %v250
      %v266 = vadd.f32 %v227, %v250
      %v267 = vadd.f32 %v228, %v250
      %v268 = vadd.f32 %v229, %v250
      %v269 = vadd.f32 %v230, %v250
      %v270 = vadd.f32 %v231, %v250
      %v271 = vadd.f32 %v232, %v250
      %v272 = vadd.f32 %v233, %v250
      %v273 = vadd.f32 %v234, %v250
      %v274 = vadd.f32 %v235, %v250
      %v275 = vadd.f32 %v236, %v250
      %v276 = vadd.f32 %v237, %v250
      %v277 = vadd.f32 %v238, %v250
      %v278 = vadd.f32 %v239, %v250
      %v279 = vadd.f32 %v240, %v250
      %v280 = vadd.f32 %v241, %v250
      %v281 = vadd.f32 %v242, %v250
      %v282 = vadd.f32 %v243, %v250
      %v283 = vadd.f32 %v244, %v250
      %v284 = vmax.f32 %v252, 0.0
      %v285 = vmax.f32 %v253, 0.0
      %v286 = vmax.f32 %v254, 0.0
      %v287 = vmax.f32 %v255, 0.0
      %v288 = vmax.f32 %v256, 0.0
      %v289 = vmax.f32 %v257, 0.0
      %v290 = vmax.f32 %v258, 0.0
      %v291 = vmax.f32 %v259, 0.0
      %v292 = vmax.f32 %v260, 0.0
      %v293 = vmax.f32 %v261, 0.0
      %v294 = vmax.f32 %v262, 0.0
      %v295 = vmax.f32 %v263, 0.0
      %v296 = vmax.f32 %v264, 0.0
      %v297 = vmax.f32 %v265, 0.0
      %v298 = vmax.f32 %v266, 0.0
      %v299 = vmax.f32 %v267, 0.0
      %v300 = vmax.f32 %v268, 0.0
      %v301 = vmax.f32 %v269, 0.0
      %v302 = vmax.f32 %v270, 0.0
      %v303 = vmax.f32 %v271, 0.0
      %v304 = vmax.f32 %v272, 0.0
      %v305 = vmax.f32 %v273, 0.0
      %v306 = vmax.f32 %v274, 0.0
      %v307 = vmax.f32 %v275, 0.0
      %v308 = vmax.f32 %v276, 0.0
      %v309 = vmax.f32 %v277, 0.0
      %v310 = vmax.f32 %v278, 0.0
      %v311 = vmax.f32 %v279, 0.0
      %v312 = vmax.f32 %v280, 0.0
      %v313 = vmax.f32 %v281, 0.0
      %v314 = vmax.f32 %v282, 0.0
      %v315 = vmax.f32 %v283, 0.0
      %316 = vst [vmem:[%s172] sm:$0xff] %v284
      %317 = vst [vmem:[%s172 + $0x8] sm:$0xff] %v285
      %318 = vst [vmem:[%s172 + $0x10] sm:$0xff] %v286
      %319 = vst [vmem:[%s172 + $0x18] sm:$0xff] %v287
      %320 = vst [vmem:[%s172 + $0x20] sm:$0xff] %v288
      %321 = vst [vmem:[%s172 + $0x28] sm:$0xff] %v289
      %322 = vst [vmem:[%s172 + $0x30] sm:$0xff] %v290
      %323 = vst [vmem:[%s172 + $0x38] sm:$0xff] %v291
      %324 = vst [vmem:[%s172 + $0x40] sm:$0xff] %v292
      %325 = vst [vmem:[%s172 + $0x48] sm:$0xff] %v293
      %326 = vst [vmem:[%s172 + $0x50] sm:$0xff] %v294
      %327 = vst [vmem:[%s172 + $0x58] sm:$0xff] %v295
      %328 = vst [vmem:[%s172 + $0x60] sm:$0xff] %v296
      %329 = vst [vmem:[%s172 + $0x68] sm:$0xff] %v297
      %330 = vst [vmem:[%s172 + $0x70] sm:$0xff] %v298
      %331 = vst [vmem:[%s172 + $0x78] sm:$0xff] %v299
      %332 = vst [vmem:[%s172 + $0x80] sm:$0xff] %v300
      %333 = vst [vmem:[%s172 + $0x88] sm:$0xff] %v301
      %334 = vst [vmem:[%s172 + $0x90] sm:$0xff] %v302
      %335 = vst [vmem:[%s172 + $0x98] sm:$0xff] %v303
      %336 = vst [vmem:[%s172 + $0xa0] sm:$0xff] %v304
      %337 = vst [vmem:[%s172 + $0xa8] sm:$0xff] %v305
      %338 = vst [vmem:[%s172 + $0xb0] sm:$0xff] %v306
      %339 = vst [vmem:[%s172 + $0xb8] sm:$0xff] %v307
      %340 = vst [vmem:[%s172 + $0xc0] sm:$0xff] %v308
      %341 = vst [vmem:[%s172 + $0xc8] sm:$0xff] %v309
      %342 = vst [vmem:[%s172 + $0xd0] sm:$0xff] %v310
      %343 = vst [vmem:[%s172 + $0xd8] sm:$0xff] %v311
      %344 = vst [vmem:[%s172 + $0xe0] sm:$0xff] %v312
      %345 = vst [vmem:[%s172 + $0xe8] sm:$0xff] %v313
      %346 = vst [vmem:[%s172 + $0xf0] sm:$0xff] %v314
      %347 = vst [vmem:[%s172 + $0xf8] sm:$0xff] %v315
      %s348 = smul.u32 32, %s14
      %p349 = scmp.lt.s32.totalorder %s348, 63
      %s350 = scalar_select %p349, %s348, 63
      %s351 = smul.addr %s350, 8
      %s352 = scalar_lea.vmem %s3, %s351
      // Predicated region
      $region33: #{up_forward.5} parent=31 // pred_check
        %p353 = pneg %p100
      $region34: #{up_forward.5} parent=31 // pred_check_branch
        %355 = sbr.rel (%p353) target = $region36
      $region35: #{up_forward.5} parent=31 // pred_region
        %s356 = smul.u32 32, %s14
      $region36: #{up_forward.5} parent=31 // pred_fallthru
        _
    $region32: #{up_forward.5} parent=5 // pred_fallthru
      _
    %p357 = scmp.le.s32.totalorder 2, %s9
    // Predicated region
    $region37: #{up_forward.5} parent=5 // pred_check
      %p358 = pneg %p357
    $region38: #{up_forward.5} parent=5 // pred_check_branch
      %360 = sbr.rel (%p358) target = $region40
    $region39: #{up_forward.5} parent=5 // pred_region
      %s361 = ssub.s32 %s9, 2
      // Predicated region
      $region41: #{up_forward.5} parent=39 // pred_check
        %p362 = pneg %p106
      $region42: #{up_forward.5} parent=39 // pred_check_branch
        %364 = sbr.rel (%p362) target = $region44
      $region43: #{up_forward.5} parent=39 // pred_region
        %s365 = smul.u32 32, %s15
        %p366 = scmp.lt.s32.totalorder %s365, 63
        %s367 = scalar_select %p366, %s365, 63
        %s368 = smul.addr %s367, 8
        %s369 = scalar_lea.vmem %s3, %s368
      $region44: #{up_forward.5} parent=39 // pred_fallthru
        _
    $region40: #{up_forward.5} parent=5 // pred_fallthru
      _
  $region6: #{up_forward.5} parent=0 // loop_footer
    %s13 = sadd.s32 1, %s9
  $region7: #{up_forward.5} parent=0 // loop_footer_branch
    %8 = sbr.rel target = $region3
  $region8: #{up_forward.5} parent=0 // loop_exit
    _

</llo_original>
